<compile_context>
chip_gen: v7x
topology: tpu7x:2x2x1
jax: 0.10.0
libtpu: 0.0.40
codegen_flags: <defaults>
</compile_context>

<pallas_src>
import jax
import jax.numpy as jnp
from jax.experimental import pallas as pl

# --- small, module-consistent hyperparameters ---
B = 2          # batch
S = 16         # sequence length
D_MODEL = 128  # d_model
N_HEADS = 4    # n_heads
D_K = 32       # d_k
D_V = 32       # d_v
D_FF = 256     # d_ff
EPS = 1e-5     # nn.LayerNorm default eps


def _layernorm(y, g, b):
    mean = jnp.mean(y, axis=-1, keepdims=True)
    var = jnp.mean((y - mean) ** 2, axis=-1, keepdims=True)
    return (y - mean) * jax.lax.rsqrt(var + EPS) * g + b


# ----------------------------------------------------------------------------
# Single fused kernel: QKV proj + per-head attention + output proj + LN1
#                      + FFN (1x1 convs as matmuls) + LN2.
# x is passed batch-folded as (B*S, D_MODEL).
# ----------------------------------------------------------------------------
def encoder_layer_kernel(x_ref, mask_ref,
                         wqkv_ref, bqkv_ref, wo_ref, bo_ref,
                         ln1_g_ref, ln1_b_ref,
                         w1_ref, b1_ref, w2_ref, b2_ref,
                         ln2_g_ref, ln2_b_ref,
                         out_ref, attn_ref):
    x = x_ref[...]                                     # (B*S, D_MODEL) f32
    x_bf = x.astype(jnp.bfloat16)

    # Fused QKV projection: one (32,128) @ (128,384) bf16 MXU matmul, f32 accumulate.
    qkv = jnp.dot(x_bf, wqkv_ref[...], preferred_element_type=jnp.float32) + bqkv_ref[...]
    hdk = N_HEADS * D_K
    # q/k/v only ever feed the MXU -> keep them bf16; softmax/LN math below stays f32.
    q = qkv[:, 0 * hdk:1 * hdk].reshape(B, S, hdk).astype(jnp.bfloat16)
    k = qkv[:, 1 * hdk:2 * hdk].reshape(B, S, hdk).astype(jnp.bfloat16)
    v = qkv[:, 2 * hdk:3 * hdk].reshape(B, S, N_HEADS * D_V).astype(jnp.bfloat16)

    inv_sqrt_dk = jnp.float32(1.0 / (D_K ** 0.5))
    neg = jnp.float32(-1e9)
    masked = mask_ref[...] > 0.5                       # hoisted once, reused for all heads

    proj = None                                        # f32 accumulator for sum_h ctx_h @ wo[h]
    for h in range(N_HEADS):                           # static head loop (4)
        qh = q[:, :, h * D_K:(h + 1) * D_K]            # (B, S, D_K) bf16
        kh = k[:, :, h * D_K:(h + 1) * D_K]
        vh = v[:, :, h * D_V:(h + 1) * D_V]

        # bf16 operands, f32 accumulation; mask fill + softmax stay f32.
        scores = jnp.einsum('bqd,bkd->bqk', qh, kh,
                            preferred_element_type=jnp.float32) * inv_sqrt_dk
        scores = jnp.where(masked, neg, scores)        # masked_fill_(attn_mask, -1e9)

        smax = jnp.max(scores, axis=-1, keepdims=True)
        e = jnp.exp(scores - smax)
        denom = jnp.sum(e, axis=-1, keepdims=True)
        attn_h = e * pl.reciprocal(denom, approx=True)  # softmax(dim=-1); EUP reciprocal
        attn_ref[:, h, :, :] = attn_h                   # direct per-head store (no jnp.stack)

        ctx_h = jnp.einsum('bqk,bkd->bqd', attn_h.astype(jnp.bfloat16), vh,
                           preferred_element_type=jnp.float32)       # (B, S, D_V) f32
        # Fold output projection into the head loop: concat(ctx) @ wo == sum_h ctx_h @ wo[h].
        part = jnp.dot(ctx_h.reshape(B * S, D_V).astype(jnp.bfloat16), wo_ref[h],
                       preferred_element_type=jnp.float32)
        proj = part if proj is None else proj + part

    out = proj + bo_ref[...]                           # (B*S, D_MODEL) f32
    enc = _layernorm(out + x, ln1_g_ref[...], ln1_b_ref[...])

    # FFN: 1x1 convs == per-position matmuls on the batch-folded slab.
    hid = jnp.dot(enc.astype(jnp.bfloat16), w1_ref[...],
                  preferred_element_type=jnp.float32) + b1_ref[...]
    hid = jnp.maximum(hid, 0.0)                        # ReLU (f32)
    y = jnp.dot(hid.astype(jnp.bfloat16), w2_ref[...],
                preferred_element_type=jnp.float32) + b2_ref[...]

    out_ref[...] = _layernorm(y + enc, ln2_g_ref[...], ln2_b_ref[...]).astype(out_ref.dtype)


# ----------------------------------------------------------------------------
# One-time parameter preparation (OUTSIDE the jitted forward): fuse QKV weights,
# split the output projection per head, and pre-cast all matmul weights to bf16.
# ----------------------------------------------------------------------------
def prepare_params(p):
    return {
        "wqkv": jnp.concatenate([p["wq"], p["wk"], p["wv"]], axis=1).astype(jnp.bfloat16),
        "bqkv": jnp.concatenate([p["bq"], p["bk"], p["bv"]], axis=1),          # f32
        "wo_h": p["wo"].reshape(N_HEADS, D_V, D_MODEL).astype(jnp.bfloat16),   # per-head rows
        "bo":   p["bo"],
        "ln1_g": p["ln1_g"], "ln1_b": p["ln1_b"],
        "w1": p["w1"].astype(jnp.bfloat16), "b1": p["b1"],
        "w2": p["w2"].astype(jnp.bfloat16), "b2": p["b2"],
        "ln2_g": p["ln2_g"], "ln2_b": p["ln2_b"],
    }


# ----------------------------------------------------------------------------
# Wrapper: one pallas_call, whole-array (VMEM-resident) operands, no grid.
# ----------------------------------------------------------------------------
@jax.jit
def encoder_layer(enc_inputs, enc_self_attn_mask, prep):
    """enc_inputs: (B, S, D_MODEL) f32; enc_self_attn_mask: (B, S, S) f32 0/1."""
    x2d = enc_inputs.reshape(B * S, D_MODEL)
    out2d, attn = pl.pallas_call(
        encoder_layer_kernel,
        out_shape=(
            jax.ShapeDtypeStruct((B * S, D_MODEL), jnp.float32),
            jax.ShapeDtypeStruct((B, N_HEADS, S, S), jnp.float32),
        ),
    )(x2d, enc_self_attn_mask,
      prep["wqkv"], prep["bqkv"], prep["wo_h"], prep["bo"],
      prep["ln1_g"], prep["ln1_b"],
      prep["w1"], prep["b1"], prep["w2"], prep["b2"],
      prep["ln2_g"], prep["ln2_b"])
    return out2d.reshape(B, S, D_MODEL), attn


# ----------------------------------------------------------------------------
# Pure-JAX f32 reference (mirrors the PyTorch forward) for a correctness check.
# ----------------------------------------------------------------------------
def layernorm_ref(y, g, b):
    mean = jnp.mean(y, axis=-1, keepdims=True)
    var = jnp.mean((y - mean) ** 2, axis=-1, keepdims=True)
    return (y - mean) / jnp.sqrt(var + EPS) * g + b


def encoder_layer_ref(x, mask, p):
    q = x @ p["wq"] + p["bq"][0]
    k = x @ p["wk"] + p["bk"][0]
    v = x @ p["wv"] + p["bv"][0]

    def heads(t, dh):
        return t.reshape(B, S, N_HEADS, dh).transpose(0, 2, 1, 3)

    qh, kh, vh = heads(q, D_K), heads(k, D_K), heads(v, D_V)
    scores = jnp.einsum("bhqd,bhkd->bhqk", qh, kh) / jnp.sqrt(jnp.float32(D_K))
    scores = jnp.where(mask[:, None, :, :] > 0.5, -1e9, scores)
    attn = jax.nn.softmax(scores, axis=-1)
    ctx = jnp.einsum("bhqk,bhkd->bhqd", attn, vh)
    ctx = ctx.transpose(0, 2, 1, 3).reshape(B, S, N_HEADS * D_V)
    out = ctx @ p["wo"] + p["bo"][0]
    enc = layernorm_ref(out + x, p["ln1_g"][0], p["ln1_b"][0])
    h = jnp.maximum(enc @ p["w1"] + p["b1"][0], 0.0)
    y = h @ p["w2"] + p["b2"][0]
    enc2 = layernorm_ref(y + enc, p["ln2_g"][0], p["ln2_b"][0])
    return enc2, attn


# ----------------------------------------------------------------------------
if __name__ == "__main__":
    key = jax.random.PRNGKey(0)
    ks = jax.random.split(key, 13)

    def init_w(k, shape, scale=0.05):
        return jax.random.normal(k, shape, jnp.float32) * scale

    params = {
        # attention projections (stored [in, out]; nn.Linear y = x W^T + b)
        "wq": init_w(ks[0], (D_MODEL, N_HEADS * D_K)),
        "bq": init_w(ks[9], (1, N_HEADS * D_K), 0.01),
        "wk": init_w(ks[1], (D_MODEL, N_HEADS * D_K)),
        "bk": init_w(ks[10], (1, N_HEADS * D_K), 0.01),
        "wv": init_w(ks[2], (D_MODEL, N_HEADS * D_V)),
        "bv": init_w(ks[11], (1, N_HEADS * D_V), 0.01),
        # output projection (nn.Linear created inside forward in the reference)
        "wo": init_w(ks[3], (N_HEADS * D_V, D_MODEL)),
        "bo": init_w(ks[4], (1, D_MODEL), 0.01),
        # LayerNorms created in forward -> default affine: weight=1, bias=0
        "ln1_g": jnp.ones((1, D_MODEL), jnp.float32),
        "ln1_b": jnp.zeros((1, D_MODEL), jnp.float32),
        "ln2_g": jnp.ones((1, D_MODEL), jnp.float32),
        "ln2_b": jnp.zeros((1, D_MODEL), jnp.float32),
        # FFN 1x1 convs as matmuls (weight[o, i, 1] stored as [i, o])
        "w1": init_w(ks[5], (D_MODEL, D_FF)),
        "b1": init_w(ks[6], (1, D_FF), 0.01),
        "w2": init_w(ks[7], (D_FF, D_MODEL)),
        "b2": init_w(ks[8], (1, D_MODEL), 0.01),
    }

    # One-time prep (weight fusion + bf16 casts) kept out of the per-call jitted path.
    prep = jax.block_until_ready(prepare_params(params))

    enc_inputs = jax.random.normal(ks[12], (B, S, D_MODEL), jnp.float32)
    # deterministic self-attention mask: mask out the last 3 key positions (True == masked),
    # passed to the kernel as float 0/1.
    mask_bool = jnp.zeros((B, S, S), jnp.bool_).at[:, :, -3:].set(True)
    mask_f32 = mask_bool.astype(jnp.float32)

    enc_out, attn = encoder_layer(enc_inputs, mask_f32, prep)
    jax.block_until_ready((enc_out, attn))

    # sanity check against the pure-JAX f32 reference of the PyTorch forward
    # (tolerances account for bf16 MXU operands everywhere + approx reciprocal softmax)
    ref_out, ref_attn = encoder_layer_ref(enc_inputs, mask_f32, params)
    assert enc_out.shape == (B, S, D_MODEL) and attn.shape == (B, N_HEADS, S, S)
    assert jnp.allclose(enc_out, ref_out, atol=3e-2, rtol=3e-2)
    assert jnp.allclose(attn, ref_attn, atol=1e-2, rtol=2e-2)

    print("KERNEL_OK")
</pallas_src>

<mosaic_0001>
module attributes {stable_mosaic.version = 11 : i64} {
  func.func @encoder_layer_kernel(%arg0: memref<32x128xf32, #tpu.memory_space<vmem>>, %arg1: memref<2x16x16xf32, #tpu.memory_space<vmem>>, %arg2: memref<128x384xbf16, #tpu.memory_space<vmem>>, %arg3: memref<1x384xf32, #tpu.memory_space<vmem>>, %arg4: memref<4x32x128xbf16, #tpu.memory_space<vmem>>, %arg5: memref<1x128xf32, #tpu.memory_space<vmem>>, %arg6: memref<1x128xf32, #tpu.memory_space<vmem>>, %arg7: memref<1x128xf32, #tpu.memory_space<vmem>>, %arg8: memref<128x256xbf16, #tpu.memory_space<vmem>>, %arg9: memref<1x256xf32, #tpu.memory_space<vmem>>, %arg10: memref<256x128xbf16, #tpu.memory_space<vmem>>, %arg11: memref<1x128xf32, #tpu.memory_space<vmem>>, %arg12: memref<1x128xf32, #tpu.memory_space<vmem>>, %arg13: memref<1x128xf32, #tpu.memory_space<vmem>>, %arg14: memref<32x128xf32, #tpu.memory_space<vmem>>, %arg15: memref<2x4x16x16xf32, #tpu.memory_space<vmem>>) attributes {dimension_semantics = [], scalar_prefetch = 0 : i64, scratch_operands = 0 : i64, tpu.core_type = #tpu.core_type<tc>} {
    %c0 = arith.constant 0 : index
    %c0_0 = arith.constant 0 : index
    %0 = vector.load %arg0[%c0, %c0_0] : memref<32x128xf32, #tpu.memory_space<vmem>>, vector<32x128xf32>
    %1 = arith.truncf %0 : vector<32x128xf32> to vector<32x128xbf16>
    %c0_1 = arith.constant 0 : index
    %c0_2 = arith.constant 0 : index
    %2 = vector.load %arg2[%c0_1, %c0_2] : memref<128x384xbf16, #tpu.memory_space<vmem>>, vector<128x384xbf16>
    %cst = arith.constant dense<0.000000e+00> : vector<32x384xf32>
    %3 = tpu.matmul %1, %2, %cst {dimension_numbers = #tpu.dot_dimension_numbers<[1], [0], [0], [1], [0, 0, 1, 1], [], []>} : vector<32x128xbf16>, vector<128x384xbf16>, vector<32x384xf32> -> vector<32x384xf32>
    %c0_3 = arith.constant 0 : index
    %c0_4 = arith.constant 0 : index
    %4 = vector.load %arg3[%c0_3, %c0_4] : memref<1x384xf32, #tpu.memory_space<vmem>>, vector<1x384xf32>
    %5 = vector.broadcast %4 : vector<1x384xf32> to vector<32x384xf32>
    %6 = arith.addf %3, %5 : vector<32x384xf32>
    %7 = vector.extract_strided_slice %6 {offsets = [0, 0], sizes = [32, 128], strides = [1, 1]} : vector<32x384xf32> to vector<32x128xf32>
    %8 = vector.shape_cast %7 : vector<32x128xf32> to vector<2x16x128xf32>
    %9 = arith.truncf %8 : vector<2x16x128xf32> to vector<2x16x128xbf16>
    %10 = vector.extract_strided_slice %6 {offsets = [0, 128], sizes = [32, 128], strides = [1, 1]} : vector<32x384xf32> to vector<32x128xf32>
    %11 = vector.shape_cast %10 : vector<32x128xf32> to vector<2x16x128xf32>
    %12 = arith.truncf %11 : vector<2x16x128xf32> to vector<2x16x128xbf16>
    %13 = vector.extract_strided_slice %6 {offsets = [0, 256], sizes = [32, 128], strides = [1, 1]} : vector<32x384xf32> to vector<32x128xf32>
    %14 = vector.shape_cast %13 : vector<32x128xf32> to vector<2x16x128xf32>
    %15 = arith.truncf %14 : vector<2x16x128xf32> to vector<2x16x128xbf16>
    %c0_5 = arith.constant 0 : index
    %c0_6 = arith.constant 0 : index
    %c0_7 = arith.constant 0 : index
    %16 = vector.load %arg1[%c0_5, %c0_6, %c0_7] : memref<2x16x16xf32, #tpu.memory_space<vmem>>, vector<2x16x16xf32>
    %cst_8 = arith.constant 5.000000e-01 : f32
    %17 = vector.broadcast %cst_8 : f32 to vector<2x16x16xf32>
    %18 = arith.cmpf ogt, %16, %17 : vector<2x16x16xf32>
    %19 = vector.extract_strided_slice %9 {offsets = [0, 0, 0], sizes = [2, 16, 32], strides = [1, 1, 1]} : vector<2x16x128xbf16> to vector<2x16x32xbf16>
    %20 = vector.extract_strided_slice %12 {offsets = [0, 0, 0], sizes = [2, 16, 32], strides = [1, 1, 1]} : vector<2x16x128xbf16> to vector<2x16x32xbf16>
    %21 = vector.extract_strided_slice %15 {offsets = [0, 0, 0], sizes = [2, 16, 32], strides = [1, 1, 1]} : vector<2x16x128xbf16> to vector<2x16x32xbf16>
    "tpu.trace_start"() <{level = 10 : i32, message = "bqd,bkd->bqk"}> : () -> ()
    %cst_9 = arith.constant dense<0.000000e+00> : vector<2x16x16xf32>
    %22 = tpu.matmul %19, %20, %cst_9 {dimension_numbers = #tpu.dot_dimension_numbers<[2], [2], [1], [1], [0, 0, 0, 1, 1, 1], [0], [0]>} : vector<2x16x32xbf16>, vector<2x16x32xbf16>, vector<2x16x16xf32> -> vector<2x16x16xf32>
    "tpu.trace_stop"() : () -> ()
    %cst_10 = arith.constant 0.176776692 : f32
    %23 = vector.broadcast %cst_10 : f32 to vector<2x16x16xf32>
    %24 = arith.mulf %22, %23 : vector<2x16x16xf32>
    %cst_11 = arith.constant -1.000000e+09 : f32
    %25 = vector.broadcast %cst_11 : f32 to vector<2x16x16xf32>
    %26 = arith.select %18, %25, %24 : vector<2x16x16xi1>, vector<2x16x16xf32>
    %cst_12 = arith.constant dense<0xFF800000> : vector<2x16xf32>
    %27 = vector.multi_reduction <maximumf>, %26, %cst_12 [2] : vector<2x16x16xf32> to vector<2x16xf32>
    %28 = vector.shape_cast %27 : vector<2x16xf32> to vector<2x16x1xf32>
    %29 = vector.broadcast %28 : vector<2x16x1xf32> to vector<2x16x16xf32>
    %30 = arith.subf %26, %29 : vector<2x16x16xf32>
    %31 = math.exp %30 : vector<2x16x16xf32>
    %cst_13 = arith.constant dense<0.000000e+00> : vector<2x16xf32>
    %32 = vector.multi_reduction <add>, %31, %cst_13 [2] : vector<2x16x16xf32> to vector<2x16xf32>
    %33 = vector.shape_cast %32 : vector<2x16xf32> to vector<2x16x1xf32>
    %34 = tpu.reciprocal %33 {approx = true} : vector<2x16x1xf32> -> vector<2x16x1xf32>
    %35 = vector.broadcast %34 : vector<2x16x1xf32> to vector<2x16x16xf32>
    %36 = arith.mulf %31, %35 : vector<2x16x16xf32>
    %c0_14 = arith.constant 0 : index
    %c0_15 = arith.constant 0 : index
    %c0_16 = arith.constant 0 : index
    %c0_17 = arith.constant 0 : index
    %37 = vector.load %arg15[%c0_14, %c0_15, %c0_16, %c0_17] : memref<2x4x16x16xf32, #tpu.memory_space<vmem>>, vector<2x1x16x16xf32>
    %38 = vector.shape_cast %37 : vector<2x1x16x16xf32> to vector<2x16x16xf32>
    %39 = vector.shape_cast %36 : vector<2x16x16xf32> to vector<2x1x16x16xf32>
    tpu.vector_store %arg15[%c0_14, %c0_15, %c0_16, %c0_17], %39 {strides = array<i32>} : memref<2x4x16x16xf32, #tpu.memory_space<vmem>>, vector<2x1x16x16xf32>,
    %40 = arith.truncf %36 : vector<2x16x16xf32> to vector<2x16x16xbf16>
    "tpu.trace_start"() <{level = 10 : i32, message = "bqk,bkd->bqd"}> : () -> ()
    %cst_18 = arith.constant dense<0.000000e+00> : vector<2x16x32xf32>
    %41 = tpu.matmul %40, %21, %cst_18 {dimension_numbers = #tpu.dot_dimension_numbers<[2], [1], [1], [2], [0, 0, 0, 1, 1, 2], [0], [0]>} : vector<2x16x16xbf16>, vector<2x16x32xbf16>, vector<2x16x32xf32> -> vector<2x16x32xf32>
    "tpu.trace_stop"() : () -> ()
    %42 = vector.shape_cast %41 : vector<2x16x32xf32> to vector<32x32xf32>
    %43 = arith.truncf %42 : vector<32x32xf32> to vector<32x32xbf16>
    %c0_19 = arith.constant 0 : index
    %c0_20 = arith.constant 0 : index
    %c0_21 = arith.constant 0 : index
    %44 = vector.load %arg4[%c0_19, %c0_20, %c0_21] : memref<4x32x128xbf16, #tpu.memory_space<vmem>>, vector<1x32x128xbf16>
    %45 = vector.shape_cast %44 : vector<1x32x128xbf16> to vector<32x128xbf16>
    %cst_22 = arith.constant dense<0.000000e+00> : vector<32x128xf32>
    %46 = tpu.matmul %43, %45, %cst_22 {dimension_numbers = #tpu.dot_dimension_numbers<[1], [0], [0], [1], [0, 0, 1, 1], [], []>} : vector<32x32xbf16>, vector<32x128xbf16>, vector<32x128xf32> -> vector<32x128xf32>
    %47 = vector.extract_strided_slice %9 {offsets = [0, 0, 32], sizes = [2, 16, 32], strides = [1, 1, 1]} : vector<2x16x128xbf16> to vector<2x16x32xbf16>
    %48 = vector.extract_strided_slice %12 {offsets = [0, 0, 32], sizes = [2, 16, 32], strides = [1, 1, 1]} : vector<2x16x128xbf16> to vector<2x16x32xbf16>
    %49 = vector.extract_strided_slice %15 {offsets = [0, 0, 32], sizes = [2, 16, 32], strides = [1, 1, 1]} : vector<2x16x128xbf16> to vector<2x16x32xbf16>
    "tpu.trace_start"() <{level = 10 : i32, message = "bqd,bkd->bqk"}> : () -> ()
    %cst_23 = arith.constant dense<0.000000e+00> : vector<2x16x16xf32>
    %50 = tpu.matmul %47, %48, %cst_23 {dimension_numbers = #tpu.dot_dimension_numbers<[2], [2], [1], [1], [0, 0, 0, 1, 1, 1], [0], [0]>} : vector<2x16x32xbf16>, vector<2x16x32xbf16>, vector<2x16x16xf32> -> vector<2x16x16xf32>
    "tpu.trace_stop"() : () -> ()
    %cst_24 = arith.constant 0.176776692 : f32
    %51 = vector.broadcast %cst_24 : f32 to vector<2x16x16xf32>
    %52 = arith.mulf %50, %51 : vector<2x16x16xf32>
    %cst_25 = arith.constant -1.000000e+09 : f32
    %53 = vector.broadcast %cst_25 : f32 to vector<2x16x16xf32>
    %54 = arith.select %18, %53, %52 : vector<2x16x16xi1>, vector<2x16x16xf32>
    %cst_26 = arith.constant dense<0xFF800000> : vector<2x16xf32>
    %55 = vector.multi_reduction <maximumf>, %54, %cst_26 [2] : vector<2x16x16xf32> to vector<2x16xf32>
    %56 = vector.shape_cast %55 : vector<2x16xf32> to vector<2x16x1xf32>
    %57 = vector.broadcast %56 : vector<2x16x1xf32> to vector<2x16x16xf32>
    %58 = arith.subf %54, %57 : vector<2x16x16xf32>
    %59 = math.exp %58 : vector<2x16x16xf32>
    %cst_27 = arith.constant dense<0.000000e+00> : vector<2x16xf32>
    %60 = vector.multi_reduction <add>, %59, %cst_27 [2] : vector<2x16x16xf32> to vector<2x16xf32>
    %61 = vector.shape_cast %60 : vector<2x16xf32> to vector<2x16x1xf32>
    %62 = tpu.reciprocal %61 {approx = true} : vector<2x16x1xf32> -> vector<2x16x1xf32>
    %63 = vector.broadcast %62 : vector<2x16x1xf32> to vector<2x16x16xf32>
    %64 = arith.mulf %59, %63 : vector<2x16x16xf32>
    %c0_28 = arith.constant 0 : index
    %c1 = arith.constant 1 : index
    %c0_29 = arith.constant 0 : index
    %c0_30 = arith.constant 0 : index
    %65 = vector.load %arg15[%c0_28, %c1, %c0_29, %c0_30] : memref<2x4x16x16xf32, #tpu.memory_space<vmem>>, vector<2x1x16x16xf32>
    %66 = vector.shape_cast %65 : vector<2x1x16x16xf32> to vector<2x16x16xf32>
    %67 = vector.shape_cast %64 : vector<2x16x16xf32> to vector<2x1x16x16xf32>
    tpu.vector_store %arg15[%c0_28, %c1, %c0_29, %c0_30], %67 {strides = array<i32>} : memref<2x4x16x16xf32, #tpu.memory_space<vmem>>, vector<2x1x16x16xf32>,
    %68 = arith.truncf %64 : vector<2x16x16xf32> to vector<2x16x16xbf16>
    "tpu.trace_start"() <{level = 10 : i32, message = "bqk,bkd->bqd"}> : () -> ()
    %cst_31 = arith.constant dense<0.000000e+00> : vector<2x16x32xf32>
    %69 = tpu.matmul %68, %49, %cst_31 {dimension_numbers = #tpu.dot_dimension_numbers<[2], [1], [1], [2], [0, 0, 0, 1, 1, 2], [0], [0]>} : vector<2x16x16xbf16>, vector<2x16x32xbf16>, vector<2x16x32xf32> -> vector<2x16x32xf32>
    "tpu.trace_stop"() : () -> ()
    %70 = vector.shape_cast %69 : vector<2x16x32xf32> to vector<32x32xf32>
    %71 = arith.truncf %70 : vector<32x32xf32> to vector<32x32xbf16>
    %c1_32 = arith.constant 1 : index
    %c0_33 = arith.constant 0 : index
    %c0_34 = arith.constant 0 : index
    %72 = vector.load %arg4[%c1_32, %c0_33, %c0_34] : memref<4x32x128xbf16, #tpu.memory_space<vmem>>, vector<1x32x128xbf16>
    %73 = vector.shape_cast %72 : vector<1x32x128xbf16> to vector<32x128xbf16>
    %cst_35 = arith.constant dense<0.000000e+00> : vector<32x128xf32>
    %74 = tpu.matmul %71, %73, %cst_35 {dimension_numbers = #tpu.dot_dimension_numbers<[1], [0], [0], [1], [0, 0, 1, 1], [], []>} : vector<32x32xbf16>, vector<32x128xbf16>, vector<32x128xf32> -> vector<32x128xf32>
    %75 = arith.addf %46, %74 : vector<32x128xf32>
    %76 = vector.extract_strided_slice %9 {offsets = [0, 0, 64], sizes = [2, 16, 32], strides = [1, 1, 1]} : vector<2x16x128xbf16> to vector<2x16x32xbf16>
    %77 = vector.extract_strided_slice %12 {offsets = [0, 0, 64], sizes = [2, 16, 32], strides = [1, 1, 1]} : vector<2x16x128xbf16> to vector<2x16x32xbf16>
    %78 = vector.extract_strided_slice %15 {offsets = [0, 0, 64], sizes = [2, 16, 32], strides = [1, 1, 1]} : vector<2x16x128xbf16> to vector<2x16x32xbf16>
    "tpu.trace_start"() <{level = 10 : i32, message = "bqd,bkd->bqk"}> : () -> ()
    %cst_36 = arith.constant dense<0.000000e+00> : vector<2x16x16xf32>
    %79 = tpu.matmul %76, %77, %cst_36 {dimension_numbers = #tpu.dot_dimension_numbers<[2], [2], [1], [1], [0, 0, 0, 1, 1, 1], [0], [0]>} : vector<2x16x32xbf16>, vector<2x16x32xbf16>, vector<2x16x16xf32> -> vector<2x16x16xf32>
    "tpu.trace_stop"() : () -> ()
    %cst_37 = arith.constant 0.176776692 : f32
    %80 = vector.broadcast %cst_37 : f32 to vector<2x16x16xf32>
    %81 = arith.mulf %79, %80 : vector<2x16x16xf32>
    %cst_38 = arith.constant -1.000000e+09 : f32
    %82 = vector.broadcast %cst_38 : f32 to vector<2x16x16xf32>
    %83 = arith.select %18, %82, %81 : vector<2x16x16xi1>, vector<2x16x16xf32>
    %cst_39 = arith.constant dense<0xFF800000> : vector<2x16xf32>
    %84 = vector.multi_reduction <maximumf>, %83, %cst_39 [2] : vector<2x16x16xf32> to vector<2x16xf32>
    %85 = vector.shape_cast %84 : vector<2x16xf32> to vector<2x16x1xf32>
    %86 = vector.broadcast %85 : vector<2x16x1xf32> to vector<2x16x16xf32>
    %87 = arith.subf %83, %86 : vector<2x16x16xf32>
    %88 = math.exp %87 : vector<2x16x16xf32>
    %cst_40 = arith.constant dense<0.000000e+00> : vector<2x16xf32>
    %89 = vector.multi_reduction <add>, %88, %cst_40 [2] : vector<2x16x16xf32> to vector<2x16xf32>
    %90 = vector.shape_cast %89 : vector<2x16xf32> to vector<2x16x1xf32>
    %91 = tpu.reciprocal %90 {approx = true} : vector<2x16x1xf32> -> vector<2x16x1xf32>
    %92 = vector.broadcast %91 : vector<2x16x1xf32> to vector<2x16x16xf32>
    %93 = arith.mulf %88, %92 : vector<2x16x16xf32>
    %c0_41 = arith.constant 0 : index
    %c2 = arith.constant 2 : index
    %c0_42 = arith.constant 0 : index
    %c0_43 = arith.constant 0 : index
    %94 = vector.load %arg15[%c0_41, %c2, %c0_42, %c0_43] : memref<2x4x16x16xf32, #tpu.memory_space<vmem>>, vector<2x1x16x16xf32>
    %95 = vector.shape_cast %94 : vector<2x1x16x16xf32> to vector<2x16x16xf32>
    %96 = vector.shape_cast %93 : vector<2x16x16xf32> to vector<2x1x16x16xf32>
    tpu.vector_store %arg15[%c0_41, %c2, %c0_42, %c0_43], %96 {strides = array<i32>} : memref<2x4x16x16xf32, #tpu.memory_space<vmem>>, vector<2x1x16x16xf32>,
    %97 = arith.truncf %93 : vector<2x16x16xf32> to vector<2x16x16xbf16>
    "tpu.trace_start"() <{level = 10 : i32, message = "bqk,bkd->bqd"}> : () -> ()
    %cst_44 = arith.constant dense<0.000000e+00> : vector<2x16x32xf32>
    %98 = tpu.matmul %97, %78, %cst_44 {dimension_numbers = #tpu.dot_dimension_numbers<[2], [1], [1], [2], [0, 0, 0, 1, 1, 2], [0], [0]>} : vector<2x16x16xbf16>, vector<2x16x32xbf16>, vector<2x16x32xf32> -> vector<2x16x32xf32>
    "tpu.trace_stop"() : () -> ()
    %99 = vector.shape_cast %98 : vector<2x16x32xf32> to vector<32x32xf32>
    %100 = arith.truncf %99 : vector<32x32xf32> to vector<32x32xbf16>
    %c2_45 = arith.constant 2 : index
    %c0_46 = arith.constant 0 : index
    %c0_47 = arith.constant 0 : index
    %101 = vector.load %arg4[%c2_45, %c0_46, %c0_47] : memref<4x32x128xbf16, #tpu.memory_space<vmem>>, vector<1x32x128xbf16>
    %102 = vector.shape_cast %101 : vector<1x32x128xbf16> to vector<32x128xbf16>
    %cst_48 = arith.constant dense<0.000000e+00> : vector<32x128xf32>
    %103 = tpu.matmul %100, %102, %cst_48 {dimension_numbers = #tpu.dot_dimension_numbers<[1], [0], [0], [1], [0, 0, 1, 1], [], []>} : vector<32x32xbf16>, vector<32x128xbf16>, vector<32x128xf32> -> vector<32x128xf32>
    %104 = arith.addf %75, %103 : vector<32x128xf32>
    %105 = vector.extract_strided_slice %9 {offsets = [0, 0, 96], sizes = [2, 16, 32], strides = [1, 1, 1]} : vector<2x16x128xbf16> to vector<2x16x32xbf16>
    %106 = vector.extract_strided_slice %12 {offsets = [0, 0, 96], sizes = [2, 16, 32], strides = [1, 1, 1]} : vector<2x16x128xbf16> to vector<2x16x32xbf16>
    %107 = vector.extract_strided_slice %15 {offsets = [0, 0, 96], sizes = [2, 16, 32], strides = [1, 1, 1]} : vector<2x16x128xbf16> to vector<2x16x32xbf16>
    "tpu.trace_start"() <{level = 10 : i32, message = "bqd,bkd->bqk"}> : () -> ()
    %cst_49 = arith.constant dense<0.000000e+00> : vector<2x16x16xf32>
    %108 = tpu.matmul %105, %106, %cst_49 {dimension_numbers = #tpu.dot_dimension_numbers<[2], [2], [1], [1], [0, 0, 0, 1, 1, 1], [0], [0]>} : vector<2x16x32xbf16>, vector<2x16x32xbf16>, vector<2x16x16xf32> -> vector<2x16x16xf32>
    "tpu.trace_stop"() : () -> ()
    %cst_50 = arith.constant 0.176776692 : f32
    %109 = vector.broadcast %cst_50 : f32 to vector<2x16x16xf32>
    %110 = arith.mulf %108, %109 : vector<2x16x16xf32>
    %cst_51 = arith.constant -1.000000e+09 : f32
    %111 = vector.broadcast %cst_51 : f32 to vector<2x16x16xf32>
    %112 = arith.select %18, %111, %110 : vector<2x16x16xi1>, vector<2x16x16xf32>
    %cst_52 = arith.constant dense<0xFF800000> : vector<2x16xf32>
    %113 = vector.multi_reduction <maximumf>, %112, %cst_52 [2] : vector<2x16x16xf32> to vector<2x16xf32>
    %114 = vector.shape_cast %113 : vector<2x16xf32> to vector<2x16x1xf32>
    %115 = vector.broadcast %114 : vector<2x16x1xf32> to vector<2x16x16xf32>
    %116 = arith.subf %112, %115 : vector<2x16x16xf32>
    %117 = math.exp %116 : vector<2x16x16xf32>
    %cst_53 = arith.constant dense<0.000000e+00> : vector<2x16xf32>
    %118 = vector.multi_reduction <add>, %117, %cst_53 [2] : vector<2x16x16xf32> to vector<2x16xf32>
    %119 = vector.shape_cast %118 : vector<2x16xf32> to vector<2x16x1xf32>
    %120 = tpu.reciprocal %119 {approx = true} : vector<2x16x1xf32> -> vector<2x16x1xf32>
    %121 = vector.broadcast %120 : vector<2x16x1xf32> to vector<2x16x16xf32>
    %122 = arith.mulf %117, %121 : vector<2x16x16xf32>
    %c0_54 = arith.constant 0 : index
    %c3 = arith.constant 3 : index
    %c0_55 = arith.constant 0 : index
    %c0_56 = arith.constant 0 : index
    %123 = vector.load %arg15[%c0_54, %c3, %c0_55, %c0_56] : memref<2x4x16x16xf32, #tpu.memory_space<vmem>>, vector<2x1x16x16xf32>
    %124 = vector.shape_cast %123 : vector<2x1x16x16xf32> to vector<2x16x16xf32>
    %125 = vector.shape_cast %122 : vector<2x16x16xf32> to vector<2x1x16x16xf32>
    tpu.vector_store %arg15[%c0_54, %c3, %c0_55, %c0_56], %125 {strides = array<i32>} : memref<2x4x16x16xf32, #tpu.memory_space<vmem>>, vector<2x1x16x16xf32>,
    %126 = arith.truncf %122 : vector<2x16x16xf32> to vector<2x16x16xbf16>
    "tpu.trace_start"() <{level = 10 : i32, message = "bqk,bkd->bqd"}> : () -> ()
    %cst_57 = arith.constant dense<0.000000e+00> : vector<2x16x32xf32>
    %127 = tpu.matmul %126, %107, %cst_57 {dimension_numbers = #tpu.dot_dimension_numbers<[2], [1], [1], [2], [0, 0, 0, 1, 1, 2], [0], [0]>} : vector<2x16x16xbf16>, vector<2x16x32xbf16>, vector<2x16x32xf32> -> vector<2x16x32xf32>
    "tpu.trace_stop"() : () -> ()
    %128 = vector.shape_cast %127 : vector<2x16x32xf32> to vector<32x32xf32>
    %129 = arith.truncf %128 : vector<32x32xf32> to vector<32x32xbf16>
    %c3_58 = arith.constant 3 : index
    %c0_59 = arith.constant 0 : index
    %c0_60 = arith.constant 0 : index
    %130 = vector.load %arg4[%c3_58, %c0_59, %c0_60] : memref<4x32x128xbf16, #tpu.memory_space<vmem>>, vector<1x32x128xbf16>
    %131 = vector.shape_cast %130 : vector<1x32x128xbf16> to vector<32x128xbf16>
    %cst_61 = arith.constant dense<0.000000e+00> : vector<32x128xf32>
    %132 = tpu.matmul %129, %131, %cst_61 {dimension_numbers = #tpu.dot_dimension_numbers<[1], [0], [0], [1], [0, 0, 1, 1], [], []>} : vector<32x32xbf16>, vector<32x128xbf16>, vector<32x128xf32> -> vector<32x128xf32>
    %133 = arith.addf %104, %132 : vector<32x128xf32>
    %c0_62 = arith.constant 0 : index
    %c0_63 = arith.constant 0 : index
    %134 = vector.load %arg5[%c0_62, %c0_63] : memref<1x128xf32, #tpu.memory_space<vmem>>, vector<1x128xf32>
    %135 = vector.broadcast %134 : vector<1x128xf32> to vector<32x128xf32>
    %136 = arith.addf %133, %135 : vector<32x128xf32>
    %137 = arith.addf %136, %0 : vector<32x128xf32>
    %c0_64 = arith.constant 0 : index
    %c0_65 = arith.constant 0 : index
    %138 = vector.load %arg6[%c0_64, %c0_65] : memref<1x128xf32, #tpu.memory_space<vmem>>, vector<1x128xf32>
    %c0_66 = arith.constant 0 : index
    %c0_67 = arith.constant 0 : index
    %139 = vector.load %arg7[%c0_66, %c0_67] : memref<1x128xf32, #tpu.memory_space<vmem>>, vector<1x128xf32>
    %cst_68 = arith.constant dense<0.000000e+00> : vector<32xf32>
    %140 = vector.multi_reduction <add>, %137, %cst_68 [1] : vector<32x128xf32> to vector<32xf32>
    %141 = vector.shape_cast %140 : vector<32xf32> to vector<32x1xf32>
    %cst_69 = arith.constant 1.280000e+02 : f32
    %142 = vector.broadcast %cst_69 : f32 to vector<32x1xf32>
    %143 = arith.divf %141, %142 : vector<32x1xf32>
    %144 = vector.broadcast %143 : vector<32x1xf32> to vector<32x128xf32>
    %145 = arith.subf %137, %144 : vector<32x128xf32>
    %146 = arith.mulf %145, %145 : vector<32x128xf32>
    %cst_70 = arith.constant dense<0.000000e+00> : vector<32xf32>
    %147 = vector.multi_reduction <add>, %146, %cst_70 [1] : vector<32x128xf32> to vector<32xf32>
    %148 = vector.shape_cast %147 : vector<32xf32> to vector<32x1xf32>
    %cst_71 = arith.constant 1.280000e+02 : f32
    %149 = vector.broadcast %cst_71 : f32 to vector<32x1xf32>
    %150 = arith.divf %148, %149 : vector<32x1xf32>
    %151 = vector.broadcast %143 : vector<32x1xf32> to vector<32x128xf32>
    %152 = arith.subf %137, %151 : vector<32x128xf32>
    %cst_72 = arith.constant 9.99999974E-6 : f32
    %153 = vector.broadcast %cst_72 : f32 to vector<32x1xf32>
    %154 = arith.addf %150, %153 : vector<32x1xf32>
    %155 = math.rsqrt %154 : vector<32x1xf32>
    %156 = vector.broadcast %155 : vector<32x1xf32> to vector<32x128xf32>
    %157 = arith.mulf %152, %156 : vector<32x128xf32>
    %158 = vector.broadcast %138 : vector<1x128xf32> to vector<32x128xf32>
    %159 = arith.mulf %157, %158 : vector<32x128xf32>
    %160 = vector.broadcast %139 : vector<1x128xf32> to vector<32x128xf32>
    %161 = arith.addf %159, %160 : vector<32x128xf32>
    %162 = arith.truncf %161 : vector<32x128xf32> to vector<32x128xbf16>
    %c0_73 = arith.constant 0 : index
    %c0_74 = arith.constant 0 : index
    %163 = vector.load %arg8[%c0_73, %c0_74] : memref<128x256xbf16, #tpu.memory_space<vmem>>, vector<128x256xbf16>
    %cst_75 = arith.constant dense<0.000000e+00> : vector<32x256xf32>
    %164 = tpu.matmul %162, %163, %cst_75 {dimension_numbers = #tpu.dot_dimension_numbers<[1], [0], [0], [1], [0, 0, 1, 1], [], []>} : vector<32x128xbf16>, vector<128x256xbf16>, vector<32x256xf32> -> vector<32x256xf32>
    %c0_76 = arith.constant 0 : index
    %c0_77 = arith.constant 0 : index
    %165 = vector.load %arg9[%c0_76, %c0_77] : memref<1x256xf32, #tpu.memory_space<vmem>>, vector<1x256xf32>
    %166 = vector.broadcast %165 : vector<1x256xf32> to vector<32x256xf32>
    %167 = arith.addf %164, %166 : vector<32x256xf32>
    %cst_78 = arith.constant 0.000000e+00 : f32
    %168 = vector.broadcast %cst_78 : f32 to vector<32x256xf32>
    %169 = arith.maximumf %167, %168 : vector<32x256xf32>
    %170 = arith.truncf %169 : vector<32x256xf32> to vector<32x256xbf16>
    %c0_79 = arith.constant 0 : index
    %c0_80 = arith.constant 0 : index
    %171 = vector.load %arg10[%c0_79, %c0_80] : memref<256x128xbf16, #tpu.memory_space<vmem>>, vector<256x128xbf16>
    %cst_81 = arith.constant dense<0.000000e+00> : vector<32x128xf32>
    %172 = tpu.matmul %170, %171, %cst_81 {dimension_numbers = #tpu.dot_dimension_numbers<[1], [0], [0], [1], [0, 0, 1, 1], [], []>} : vector<32x256xbf16>, vector<256x128xbf16>, vector<32x128xf32> -> vector<32x128xf32>
    %c0_82 = arith.constant 0 : index
    %c0_83 = arith.constant 0 : index
    %173 = vector.load %arg11[%c0_82, %c0_83] : memref<1x128xf32, #tpu.memory_space<vmem>>, vector<1x128xf32>
    %174 = vector.broadcast %173 : vector<1x128xf32> to vector<32x128xf32>
    %175 = arith.addf %172, %174 : vector<32x128xf32>
    %176 = arith.addf %175, %161 : vector<32x128xf32>
    %c0_84 = arith.constant 0 : index
    %c0_85 = arith.constant 0 : index
    %177 = vector.load %arg12[%c0_84, %c0_85] : memref<1x128xf32, #tpu.memory_space<vmem>>, vector<1x128xf32>
    %c0_86 = arith.constant 0 : index
    %c0_87 = arith.constant 0 : index
    %178 = vector.load %arg13[%c0_86, %c0_87] : memref<1x128xf32, #tpu.memory_space<vmem>>, vector<1x128xf32>
    %cst_88 = arith.constant dense<0.000000e+00> : vector<32xf32>
    %179 = vector.multi_reduction <add>, %176, %cst_88 [1] : vector<32x128xf32> to vector<32xf32>
    %180 = vector.shape_cast %179 : vector<32xf32> to vector<32x1xf32>
    %cst_89 = arith.constant 1.280000e+02 : f32
    %181 = vector.broadcast %cst_89 : f32 to vector<32x1xf32>
    %182 = arith.divf %180, %181 : vector<32x1xf32>
    %183 = vector.broadcast %182 : vector<32x1xf32> to vector<32x128xf32>
    %184 = arith.subf %176, %183 : vector<32x128xf32>
    %185 = arith.mulf %184, %184 : vector<32x128xf32>
    %cst_90 = arith.constant dense<0.000000e+00> : vector<32xf32>
    %186 = vector.multi_reduction <add>, %185, %cst_90 [1] : vector<32x128xf32> to vector<32xf32>
    %187 = vector.shape_cast %186 : vector<32xf32> to vector<32x1xf32>
    %cst_91 = arith.constant 1.280000e+02 : f32
    %188 = vector.broadcast %cst_91 : f32 to vector<32x1xf32>
    %189 = arith.divf %187, %188 : vector<32x1xf32>
    %190 = vector.broadcast %182 : vector<32x1xf32> to vector<32x128xf32>
    %191 = arith.subf %176, %190 : vector<32x128xf32>
    %cst_92 = arith.constant 9.99999974E-6 : f32
    %192 = vector.broadcast %cst_92 : f32 to vector<32x1xf32>
    %193 = arith.addf %189, %192 : vector<32x1xf32>
    %194 = math.rsqrt %193 : vector<32x1xf32>
    %195 = vector.broadcast %194 : vector<32x1xf32> to vector<32x128xf32>
    %196 = arith.mulf %191, %195 : vector<32x128xf32>
    %197 = vector.broadcast %177 : vector<1x128xf32> to vector<32x128xf32>
    %198 = arith.mulf %196, %197 : vector<32x128xf32>
    %199 = vector.broadcast %178 : vector<1x128xf32> to vector<32x128xf32>
    %200 = arith.addf %198, %199 : vector<32x128xf32>
    %c0_93 = arith.constant 0 : index
    %c0_94 = arith.constant 0 : index
    %201 = vector.load %arg14[%c0_93, %c0_94] : memref<32x128xf32, #tpu.memory_space<vmem>>, vector<32x128xf32>
    tpu.vector_store %arg14[%c0_93, %c0_94], %200 {strides = array<i32>} : memref<32x128xf32, #tpu.memory_space<vmem>>, vector<32x128xf32>,
    return
  }
}

</mosaic_0001>

<llo_original>
// kernel: encoder_layer.1
$region0: #{encoder_layer.1}
  #allocation0 [shape = 'u32[]', space=smem, size = 0x4, offset = 0x4, fixed_abs, tag = 'smem constant byte address 0x4 - core index']
  #allocation1 [shape = 'u32[144,128]{1,0:T(1,128)}', space=vmem, size = 0x12000, scoped, tag = 'internal scratch']
  %s0 = inlined_call_operand.hbm [shape: f32[32,128], index: 0, kind: input, shape index: {}]
  %s1 = inlined_call_operand.hbm [shape: f32[2,16,16], index: 1, kind: input, shape index: {}]
  %s2 = inlined_call_operand.hbm [shape: bf16[128,384], index: 2, kind: input, shape index: {}]
  %s3 = inlined_call_operand.vmem [shape: f32[1,384], index: 3, kind: input, shape index: {}]
  %s4 = inlined_call_operand.hbm [shape: bf16[4,32,128], index: 4, kind: input, shape index: {}]
  %s5 = inlined_call_operand.vmem [shape: f32[1,128], index: 5, kind: input, shape index: {}]
  %s6 = inlined_call_operand.vmem [shape: f32[1,128], index: 6, kind: input, shape index: {}]
  %s7 = inlined_call_operand.vmem [shape: f32[1,128], index: 7, kind: input, shape index: {}]
  %s8 = inlined_call_operand.hbm [shape: bf16[128,256], index: 8, kind: input, shape index: {}]
  %s9 = inlined_call_operand.vmem [shape: f32[1,256], index: 9, kind: input, shape index: {}]
  %s10 = inlined_call_operand.hbm [shape: bf16[256,128], index: 10, kind: input, shape index: {}]
  %s11 = inlined_call_operand.vmem [shape: f32[1,128], index: 11, kind: input, shape index: {}]
  %s12 = inlined_call_operand.vmem [shape: f32[1,128], index: 12, kind: input, shape index: {}]
  %s13 = inlined_call_operand.vmem [shape: f32[1,128], index: 13, kind: input, shape index: {}]
  %s14 = inlined_call_operand.hbm [shape: f32[32,128], index: 14, kind: output, shape index: {0}]
  %s15 = inlined_call_operand.hbm [shape: f32[2,4,16,16], index: 15, kind: output, shape index: {1}]
  %16 = xla_tuple %s14, %s15
  %s17 = sld [smem:[#allocation0]]
  $region98: #{encoder_layer.1} parent=0
    _
  %s19 = ssub.s32 1, %s17
  %s20 = scalar_select 0, %s19, %s17
  $region1: #{encoder_layer.1} parent=0
    #allocation2 [shape = 'u8[16384]{0}', space=vmem, size = 0x4000, scoped, tag = 'input window, operand 0, single buffered']
    #allocation3 [shape = 's32[1]{0}', space=sflag, size = 0x4, scoped, tag = 'scoped memory for encoder_layer.1']
    #allocation4 [shape = 's32[1]{0}', space=sflag, size = 0x4, scoped, tag = 'scoped memory for encoder_layer.1']
    #allocation5 [shape = 'u8[16384]{0}', space=vmem, size = 0x4000, scoped, tag = 'input window, operand 1, single buffered']
    #allocation6 [shape = 's32[1]{0}', space=sflag, size = 0x4, scoped, tag = 'scoped memory for encoder_layer.1']
    #allocation7 [shape = 'u8[98304]{0}', space=vmem, size = 0x18000, scoped, tag = 'input window, operand 2, single buffered']
    #allocation8 [shape = 'u8[32768]{0}', space=vmem, size = 0x8000, scoped, tag = 'input window, operand 4, single buffered']
    #allocation9 [shape = 's32[1]{0}', space=sflag, size = 0x4, scoped, tag = 'scoped memory for encoder_layer.1']
    #allocation10 [shape = 'u8[65536]{0}', space=vmem, size = 0x10000, scoped, tag = 'input window, operand 8, single buffered']
    #allocation11 [shape = 'u8[65536]{0}', space=vmem, size = 0x10000, scoped, tag = 'input window, operand 10, single buffered']
    #allocation12 [shape = 's32[1]{0}', space=sflag, size = 0x4, scoped, tag = 'scoped memory for encoder_layer.1']
    #allocation13 [shape = 'u8[16384]{0}', space=vmem, size = 0x4000, scoped, tag = 'output window, operand 0, single buffered']
    #allocation14 [shape = 'u8[65536]{0}', space=vmem, size = 0x10000, scoped, tag = 'output window, operand 1, single buffered']
    #allocation15 [shape = 's32[1]{0}', space=sflag, size = 0x4, scoped, tag = 'scoped memory for encoder_layer.1']
    %21 = vsyncpa [#allocation3], 0
    %22 = vsyncpa [#allocation6], 0
    %23 = vsyncpa [#allocation9], 0
    %24 = vsyncpa [#allocation12], 0
    %25 = vsyncpa [#allocation4], 0
    %26 = vsyncpa [#allocation15], 0
    // Predicated region
    $region2: #{encoder_layer.1} parent=1 // pred_check
      _
    $region3: #{encoder_layer.1} parent=1 // pred_check_branch
      %28 = sbr.rel (0) target = $region5
    $region4: #{encoder_layer.1} parent=1 // pred_region
      %s30 = ssub.s32 512, 512
      %31 = vsyncadd [#allocation3], %s30
      %s32 = sshll.u32 [#allocation2], 4
      %s33 = int_to_ptr.vmem [resolvable:$true] %s32
      %38 = dma.hbm_to_vmem [thread:$0]  %s0, 512, %s33, [#allocation3], 128, 128, 8
    $region5: #{encoder_layer.1} parent=1 // pred_fallthru
      _
    // Predicated region
    $region6: #{encoder_layer.1} parent=1 // pred_check
      _
    $region7: #{encoder_layer.1} parent=1 // pred_check_branch
      %40 = sbr.rel (0) target = $region9
    $region8: #{encoder_layer.1} parent=1 // pred_region
      %s42 = ssub.s32 512, 512
      %43 = vsyncadd [#allocation6], %s42
      %s44 = sshll.u32 [#allocation5], 4
      %s45 = int_to_ptr.vmem [resolvable:$true] %s44
      %50 = dma.hbm_to_vmem [thread:$0]  %s1, 512, %s45, [#allocation6], 128, 128, 8
    $region9: #{encoder_layer.1} parent=1 // pred_fallthru
      _
    // Predicated region
    $region10: #{encoder_layer.1} parent=1 // pred_check
      _
    $region11: #{encoder_layer.1} parent=1 // pred_check_branch
      %52 = sbr.rel (0) target = $region13
    $region12: #{encoder_layer.1} parent=1 // pred_region
      %s54 = ssub.s32 3072, 3072
      %55 = vsyncadd [#allocation6], %s54
      %s56 = sshll.u32 [#allocation7], 4
      %s57 = int_to_ptr.vmem [resolvable:$true] %s56
      %62 = dma.hbm_to_vmem [thread:$0]  %s2, 3072, %s57, [#allocation6], 192, 192, 12
    $region13: #{encoder_layer.1} parent=1 // pred_fallthru
      _
    // Predicated region
    $region14: #{encoder_layer.1} parent=1 // pred_check
      _
    $region15: #{encoder_layer.1} parent=1 // pred_check_branch
      %64 = sbr.rel (0) target = $region17
    $region16: #{encoder_layer.1} parent=1 // pred_region
      _
    $region17: #{encoder_layer.1} parent=1 // pred_fallthru
      _
    // Predicated region
    $region18: #{encoder_layer.1} parent=1 // pred_check
      _
    $region19: #{encoder_layer.1} parent=1 // pred_check_branch
      %66 = sbr.rel (0) target = $region21
    $region20: #{encoder_layer.1} parent=1 // pred_region
      %s68 = ssub.s32 1024, 1024
      %69 = vsyncadd [#allocation9], %s68
      %s70 = sshll.u32 [#allocation8], 4
      %s71 = int_to_ptr.vmem [resolvable:$true] %s70
      %76 = dma.hbm_to_vmem [thread:$0]  %s4, 1024, %s71, [#allocation9], 64, 64, 4
    $region21: #{encoder_layer.1} parent=1 // pred_fallthru
      _
    // Predicated region
    $region22: #{encoder_layer.1} parent=1 // pred_check
      _
    $region23: #{encoder_layer.1} parent=1 // pred_check_branch
      %78 = sbr.rel (0) target = $region25
    $region24: #{encoder_layer.1} parent=1 // pred_region
      _
    $region25: #{encoder_layer.1} parent=1 // pred_fallthru
      _
    // Predicated region
    $region26: #{encoder_layer.1} parent=1 // pred_check
      _
    $region27: #{encoder_layer.1} parent=1 // pred_check_branch
      %80 = sbr.rel (0) target = $region29
    $region28: #{encoder_layer.1} parent=1 // pred_region
      _
    $region29: #{encoder_layer.1} parent=1 // pred_fallthru
      _
    // Predicated region
    $region30: #{encoder_layer.1} parent=1 // pred_check
      _
    $region31: #{encoder_layer.1} parent=1 // pred_check_branch
      %82 = sbr.rel (0) target = $region33
    $region32: #{encoder_layer.1} parent=1 // pred_region
      _
    $region33: #{encoder_layer.1} parent=1 // pred_fallthru
      _
    // Predicated region
    $region34: #{encoder_layer.1} parent=1 // pred_check
      _
    $region35: #{encoder_layer.1} parent=1 // pred_check_branch
      %84 = sbr.rel (0) target = $region37
    $region36: #{encoder_layer.1} parent=1 // pred_region
      %s86 = ssub.s32 2048, 2048
      %87 = vsyncadd [#allocation9], %s86
      %s88 = sshll.u32 [#allocation10], 4
      %s89 = int_to_ptr.vmem [resolvable:$true] %s88
      %94 = dma.hbm_to_vmem [thread:$0]  %s8, 2048, %s89, [#allocation9], 128, 128, 8
    $region37: #{encoder_layer.1} parent=1 // pred_fallthru
      _
    // Predicated region
    $region38: #{encoder_layer.1} parent=1 // pred_check
      _
    $region39: #{encoder_layer.1} parent=1 // pred_check_branch
      %96 = sbr.rel (0) target = $region41
    $region40: #{encoder_layer.1} parent=1 // pred_region
      _
    $region41: #{encoder_layer.1} parent=1 // pred_fallthru
      _
    // Predicated region
    $region42: #{encoder_layer.1} parent=1 // pred_check
      _
    $region43: #{encoder_layer.1} parent=1 // pred_check_branch
      %98 = sbr.rel (0) target = $region45
    $region44: #{encoder_layer.1} parent=1 // pred_region
      %s100 = ssub.s32 2048, 2048
      %101 = vsyncadd [#allocation12], %s100
      %s102 = sshll.u32 [#allocation11], 4
      %s103 = int_to_ptr.vmem [resolvable:$true] %s102
      %108 = dma.hbm_to_vmem [thread:$0]  %s10, 2048, %s103, [#allocation12], 64, 64, 4
    $region45: #{encoder_layer.1} parent=1 // pred_fallthru
      _
    // Predicated region
    $region46: #{encoder_layer.1} parent=1 // pred_check
      _
    $region47: #{encoder_layer.1} parent=1 // pred_check_branch
      %110 = sbr.rel (0) target = $region49
    $region48: #{encoder_layer.1} parent=1 // pred_region
      _
    $region49: #{encoder_layer.1} parent=1 // pred_fallthru
      _
    // Predicated region
    $region50: #{encoder_layer.1} parent=1 // pred_check
      _
    $region51: #{encoder_layer.1} parent=1 // pred_check_branch
      %112 = sbr.rel (0) target = $region53
    $region52: #{encoder_layer.1} parent=1 // pred_region
      _
    $region53: #{encoder_layer.1} parent=1 // pred_fallthru
      _
    // Predicated region
    $region54: #{encoder_layer.1} parent=1 // pred_check
      _
    $region55: #{encoder_layer.1} parent=1 // pred_check_branch
      %114 = sbr.rel (0) target = $region57
    $region56: #{encoder_layer.1} parent=1 // pred_region
      _
    $region57: #{encoder_layer.1} parent=1 // pred_fallthru
      _
    // Predicated region
    $region58: #{encoder_layer.1} parent=1 // pred_check
      _
    $region59: #{encoder_layer.1} parent=1 // pred_check_branch
      %116 = sbr.rel (0) target = $region61
    $region60: #{encoder_layer.1} parent=1 // pred_region
      %117 = dma.done [#allocation3], 512
    $region61: #{encoder_layer.1} parent=1 // pred_fallthru
      _
    // Predicated region
    $region62: #{encoder_layer.1} parent=1 // pred_check
      _
    $region63: #{encoder_layer.1} parent=1 // pred_check_branch
      %119 = sbr.rel (0) target = $region65
    $region64: #{encoder_layer.1} parent=1 // pred_region
      %120 = dma.done [#allocation6], 512
    $region65: #{encoder_layer.1} parent=1 // pred_fallthru
      _
    // Predicated region
    $region66: #{encoder_layer.1} parent=1 // pred_check
      _
    $region67: #{encoder_layer.1} parent=1 // pred_check_branch
      %122 = sbr.rel (0) target = $region69
    $region68: #{encoder_layer.1} parent=1 // pred_region
      %123 = dma.done [#allocation6], 3072
    $region69: #{encoder_layer.1} parent=1 // pred_fallthru
      _
    // Predicated region
    $region70: #{encoder_layer.1} parent=1 // pred_check
      _
    $region71: #{encoder_layer.1} parent=1 // pred_check_branch
      %125 = sbr.rel (0) target = $region73
    $region72: #{encoder_layer.1} parent=1 // pred_region
      %126 = dma.done [#allocation9], 1024
    $region73: #{encoder_layer.1} parent=1 // pred_fallthru
      _
    // Predicated region
    $region74: #{encoder_layer.1} parent=1 // pred_check
      _
    $region75: #{encoder_layer.1} parent=1 // pred_check_branch
      %128 = sbr.rel (0) target = $region77
    $region76: #{encoder_layer.1} parent=1 // pred_region
      %129 = dma.done [#allocation9], 2048
    $region77: #{encoder_layer.1} parent=1 // pred_fallthru
      _
    // Predicated region
    $region78: #{encoder_layer.1} parent=1 // pred_check
      _
    $region79: #{encoder_layer.1} parent=1 // pred_check_branch
      %131 = sbr.rel (0) target = $region81
    $region80: #{encoder_layer.1} parent=1 // pred_region
      %132 = dma.done [#allocation12], 2048
    $region81: #{encoder_layer.1} parent=1 // pred_fallthru
      _
    %v134 = vld [vmem:[#allocation2] sm:$0xff]
    %v135 = vld [vmem:[#allocation2 + $0x8] sm:$0xff]
    %v136 = vld [vmem:[#allocation2 + $0x10] sm:$0xff]
    %v137 = vld [vmem:[#allocation2 + $0x18] sm:$0xff]
    %v138 = vpack.c.bf16 %v135, %v134
    %v139 = vpack.c.bf16 %v137, %v136
    %v140 = vld [vmem:[#allocation7] sm:$0xff]
    %v141 = vld [vmem:[#allocation7 + $0x8] sm:$0xf]
    %v142 = vld [vmem:[#allocation7 + $0xc] sm:$0xff]
    %v143 = vld [vmem:[#allocation7 + $0x14] sm:$0xf]
    %v144 = vld [vmem:[#allocation7 + $0x18] sm:$0xff]
    %v145 = vld [vmem:[#allocation7 + $0x20] sm:$0xf]
    %v146 = vld [vmem:[#allocation7 + $0x24] sm:$0xff]
    %v147 = vld [vmem:[#allocation7 + $0x2c] sm:$0xf]
    %v148 = vld [vmem:[#allocation7 + $0x30] sm:$0xff]
    %v149 = vld [vmem:[#allocation7 + $0x38] sm:$0xf]
    %v150 = vld [vmem:[#allocation7 + $0x3c] sm:$0xff]
    %v151 = vld [vmem:[#allocation7 + $0x44] sm:$0xf]
    %v152 = vld [vmem:[#allocation7 + $0x48] sm:$0xff]
    %v153 = vld [vmem:[#allocation7 + $0x50] sm:$0xf]
    %v154 = vld [vmem:[#allocation7 + $0x54] sm:$0xff]
    %v155 = vld [vmem:[#allocation7 + $0x5c] sm:$0xf]
    %v156 = vld [vmem:[#allocation7 + $0x60] sm:$0xff]
    %v157 = vld [vmem:[#allocation7 + $0x68] sm:$0xf]
    %v158 = vld [vmem:[#allocation7 + $0x6c] sm:$0xff]
    %v159 = vld [vmem:[#allocation7 + $0x74] sm:$0xf]
    %v160 = vld [vmem:[#allocation7 + $0x78] sm:$0xff]
    %v161 = vld [vmem:[#allocation7 + $0x80] sm:$0xf]
    %v162 = vld [vmem:[#allocation7 + $0x84] sm:$0xff]
    %v163 = vld [vmem:[#allocation7 + $0x8c] sm:$0xf]
    %v164 = vld [vmem:[#allocation7 + $0x90] sm:$0xff]
    %v165 = vld [vmem:[#allocation7 + $0x98] sm:$0xf]
    %v166 = vld [vmem:[#allocation7 + $0x9c] sm:$0xff]
    %v167 = vld [vmem:[#allocation7 + $0xa4] sm:$0xf]
    %v168 = vld [vmem:[#allocation7 + $0xa8] sm:$0xff]
    %v169 = vld [vmem:[#allocation7 + $0xb0] sm:$0xf]
    %v170 = vld [vmem:[#allocation7 + $0xb4] sm:$0xff]
    %v171 = vld [vmem:[#allocation7 + $0xbc] sm:$0xf]
    %v172 = vld [vmem:[%s3] sm:$0x7]
    %v174 = vlaneseq
    %v175 = vshrl.u32 %v174, 7
    %v176 = vsub.s32 0, %v175
    %v177 = vrot.slane %v172, %v176
    %v178 = vlaneseq
    %v179 = vshrl.u32 %v178, 7
    %v180 = vsub.s32 1, %v179
    %v181 = vrot.slane %v172, %v180
    %v182 = vlaneseq
    %v183 = vshrl.u32 %v182, 7
    %v184 = vsub.s32 2, %v183
    %v185 = vrot.slane %v172, %v184
    %v221 = vunpack.c.l.b16 %v140
    %v222 = vunpack.c.h.b16 %v140
    %v223 = vunpack.c.l.b16 %v141
    %v224 = vunpack.c.l.b16 %v142
    %v225 = vunpack.c.h.b16 %v142
    %v226 = vunpack.c.l.b16 %v143
    %v227 = vunpack.c.l.b16 %v144
    %v228 = vunpack.c.h.b16 %v144
    %v229 = vunpack.c.l.b16 %v145
    %v230 = vunpack.c.l.b16 %v146
    %v231 = vunpack.c.h.b16 %v146
    %v232 = vunpack.c.l.b16 %v147
    %v233 = vunpack.c.l.b16 %v148
    %v234 = vunpack.c.h.b16 %v148
    %v235 = vunpack.c.l.b16 %v149
    %v236 = vunpack.c.l.b16 %v150
    %v237 = vunpack.c.h.b16 %v150
    %v238 = vunpack.c.l.b16 %v151
    %v239 = vunpack.c.l.b16 %v152
    %v240 = vunpack.c.h.b16 %v152
    %v241 = vunpack.c.l.b16 %v153
    %v242 = vunpack.c.l.b16 %v154
    %v243 = vunpack.c.h.b16 %v154
    %v244 = vunpack.c.l.b16 %v155
    %v245 = vunpack.c.l.b16 %v156
    %v246 = vunpack.c.h.b16 %v156
    %v247 = vunpack.c.l.b16 %v157
    %v248 = vunpack.c.l.b16 %v158
    %v249 = vunpack.c.h.b16 %v158
    %v250 = vunpack.c.l.b16 %v159
    %v251 = vunpack.c.l.b16 %v160
    %v252 = vunpack.c.h.b16 %v160
    %v253 = vunpack.c.l.b16 %v161
    %v254 = vunpack.c.l.b16 %v162
    %v255 = vunpack.c.h.b16 %v162
    %v256 = vunpack.c.l.b16 %v163
    %v257 = vunpack.c.l.b16 %v164
    %v258 = vunpack.c.h.b16 %v164
    %v259 = vunpack.c.l.b16 %v165
    %v260 = vunpack.c.l.b16 %v166
    %v261 = vunpack.c.h.b16 %v166
    %v262 = vunpack.c.l.b16 %v167
    %v263 = vunpack.c.l.b16 %v168
    %v264 = vunpack.c.h.b16 %v168
    %v265 = vunpack.c.l.b16 %v169
    %v266 = vunpack.c.l.b16 %v170
    %v267 = vunpack.c.h.b16 %v170
    %v268 = vunpack.c.l.b16 %v171
    %v269 = vpack.c.b16 %v224, %v221
    %v270 = vpack.c.b16 %v225, %v222
    %v271 = vpack.c.b16 %v226, %v223
    %v272 = vpack.c.b16 %v230, %v227
    %v273 = vpack.c.b16 %v231, %v228
    %v274 = vpack.c.b16 %v232, %v229
    %v275 = vpack.c.b16 %v236, %v233
    %v276 = vpack.c.b16 %v237, %v234
    %v277 = vpack.c.b16 %v238, %v235
    %v278 = vpack.c.b16 %v242, %v239
    %v279 = vpack.c.b16 %v243, %v240
    %v280 = vpack.c.b16 %v244, %v241
    %v281 = vpack.c.b16 %v248, %v245
    %v282 = vpack.c.b16 %v249, %v246
    %v283 = vpack.c.b16 %v250, %v247
    %v284 = vpack.c.b16 %v254, %v251
    %v285 = vpack.c.b16 %v255, %v252
    %v286 = vpack.c.b16 %v256, %v253
    %v287 = vpack.c.b16 %v260, %v257
    %v288 = vpack.c.b16 %v261, %v258
    %v289 = vpack.c.b16 %v262, %v259
    %v290 = vpack.c.b16 %v266, %v263
    %v291 = vpack.c.b16 %v267, %v264
    %v292 = vpack.c.b16 %v268, %v265
    %317 = vmatprep.subr.bf16.mxu0 %v270
    %318 = vmatpush1.bf16.msra.mxu0 %v269
    %319 = vmatprep.subr.bf16.mxu0 %v273
    %320 = vmatpush1.bf16.msra.mxu0 %v272
    %321 = vmatprep.subr.bf16.mxu0 %v276
    %322 = vmatpush1.bf16.msra.mxu0 %v275
    %323 = vmatprep.subr.bf16.mxu0 %v279
    %324 = vmatpush1.bf16.msra.mxu0 %v278
    %325 = vmatprep.subr.bf16.mxu0 %v282
    %326 = vmatpush1.bf16.msra.mxu0 %v281
    %327 = vmatprep.subr.bf16.mxu0 %v285
    %328 = vmatpush1.bf16.msra.mxu0 %v284
    %329 = vmatprep.subr.bf16.mxu0 %v288
    %330 = vmatpush1.bf16.msra.mxu0 %v287
    %331 = vmatprep.subr.bf16.mxu0 %v291
    %332 = vmatpush1.bf16.msra.mxu0 %v290
    %333 = vmatprep.subr.bf16.mxu0 0
    %334 = vmatpush1.bf16.msra.mxu0 0
    %335 = vmatprep.subr.bf16.mxu0 0
    %336 = vmatpush1.bf16.msra.mxu0 0
    %337 = vmatprep.subr.bf16.mxu0 0
    %338 = vmatpush1.bf16.msra.mxu0 0
    %339 = vmatprep.subr.bf16.mxu0 0
    %340 = vmatpush1.bf16.msra.mxu0 0
    %341 = vmatprep.subr.bf16.mxu0 0
    %342 = vmatpush1.bf16.msra.mxu0 0
    %343 = vmatprep.subr.bf16.mxu0 0
    %344 = vmatpush1.bf16.msra.mxu0 0
    %345 = vmatprep.subr.bf16.mxu0 0
    %346 = vmatpush1.bf16.msra.mxu0 0
    %347 = vmatprep.subr.bf16.mxu0 0
    %348 = vmatpush1.bf16.msra.mxu0 0
    %349 = vmatprep.mubr.bf16.mxu0 0
    %350 = vmatmul.mubr.bf16.gmra.mrb[0].mxu0 %v138
    %v351 = vpop.f32.mrb[0].mxu0
    %v352 = vadd.f32 %v177, %v351
    %v353 = vpop.f32.mrb[0].mxu0
    %v354 = vadd.f32 %v181, %v353
    %v355 = vpop.f32.mrb[0].mxu0
    %v356 = vadd.f32 %v177, %v355
    %v357 = vpop.f32.mrb[0].mxu0
    %v358 = vadd.f32 %v181, %v357
    %359 = vmatprep.mubr.bf16.mxu0 0
    %360 = vmatmul.mubr.bf16.gmra.mrb[0].mxu0 %v139
    %v361 = vpop.f32.mrb[0].mxu0
    %v362 = vadd.f32 %v177, %v361
    %v363 = vpop.f32.mrb[0].mxu0
    %v364 = vadd.f32 %v181, %v363
    %v365 = vpop.f32.mrb[0].mxu0
    %v366 = vadd.f32 %v177, %v365
    %v367 = vpop.f32.mrb[0].mxu0
    %v368 = vadd.f32 %v181, %v367
    %369 = vdwg.mxu0
    %370 = vmatprep.subr.bf16.mxu0 0
    %371 = vmatpush1.bf16.msra.mxu0 %v271
    %372 = vmatprep.subr.bf16.mxu0 0
    %373 = vmatpush1.bf16.msra.mxu0 %v274
    %374 = vmatprep.subr.bf16.mxu0 0
    %375 = vmatpush1.bf16.msra.mxu0 %v277
    %376 = vmatprep.subr.bf16.mxu0 0
    %377 = vmatpush1.bf16.msra.mxu0 %v280
    %378 = vmatprep.subr.bf16.mxu0 0
    %379 = vmatpush1.bf16.msra.mxu0 %v283
    %380 = vmatprep.subr.bf16.mxu0 0
    %381 = vmatpush1.bf16.msra.mxu0 %v286
    %382 = vmatprep.subr.bf16.mxu0 0
    %383 = vmatpush1.bf16.msra.mxu0 %v289
    %384 = vmatprep.subr.bf16.mxu0 0
    %385 = vmatpush1.bf16.msra.mxu0 %v292
    %386 = vmatprep.subr.bf16.mxu0 0
    %387 = vmatpush1.bf16.msra.mxu0 0
    %388 = vmatprep.subr.bf16.mxu0 0
    %389 = vmatpush1.bf16.msra.mxu0 0
    %390 = vmatprep.subr.bf16.mxu0 0
    %391 = vmatpush1.bf16.msra.mxu0 0
    %392 = vmatprep.subr.bf16.mxu0 0
    %393 = vmatpush1.bf16.msra.mxu0 0
    %394 = vmatprep.subr.bf16.mxu0 0
    %395 = vmatpush1.bf16.msra.mxu0 0
    %396 = vmatprep.subr.bf16.mxu0 0
    %397 = vmatpush1.bf16.msra.mxu0 0
    %398 = vmatprep.subr.bf16.mxu0 0
    %399 = vmatpush1.bf16.msra.mxu0 0
    %400 = vmatprep.subr.bf16.mxu0 0
    %401 = vmatpush1.bf16.msra.mxu0 0
    %402 = vmatprep.mubr.bf16.mxu0 0
    %403 = vmatmul.mubr.bf16.gmra.mrb[0].mxu0 %v138
    %v404 = vpop.f32.mrb[0].mxu0
    %v405 = vadd.f32 %v185, %v404
    %v406 = vpop.f32.mrb[0].mxu0
    %v407 = vpop.f32.mrb[0].mxu0
    %v408 = vadd.f32 %v185, %v407
    %v409 = vpop.f32.mrb[0].mxu0
    %410 = vmatprep.mubr.bf16.mxu0 0
    %411 = vmatmul.mubr.bf16.gmra.mrb[0].mxu0 %v139
    %v412 = vpop.f32.mrb[0].mxu0
    %v413 = vadd.f32 %v185, %v412
    %v414 = vpop.f32.mrb[0].mxu0
    %v415 = vpop.f32.mrb[0].mxu0
    %v416 = vadd.f32 %v185, %v415
    %v417 = vpop.f32.mrb[0].mxu0
    %418 = vdwg.mxu0
    %v419 = vpack.c.bf16 %v356, %v352
    %v420 = vpack.c.bf16 %v366, %v362
    %v421 = vpack.c.bf16 %v358, %v354
    %v422 = vpack.c.bf16 %v368, %v364
    %v423 = vpack.c.bf16 %v408, %v405
    %v424 = vpack.c.bf16 %v416, %v413
    %v425 = vld [vmem:[#allocation5] sm:$0xff]
    %v426 = vld [vmem:[#allocation5 + $0x8] sm:$0xff]
    %v427 = vld [vmem:[#allocation5 + $0x10] sm:$0xff]
    %v428 = vld [vmem:[#allocation5 + $0x18] sm:$0xff]
    %vm429 = vcmp.gt.f32.partialorder %v425, 0.5
    %vm430 = vcmp.gt.f32.partialorder %v426, 0.5
    %vm431 = vcmp.gt.f32.partialorder %v427, 0.5
    %vm432 = vcmp.gt.f32.partialorder %v428, 0.5
    %vm433 = vcmask 261120
    %v435 = vsel %vm433, %v419, 0
    %v438 = vsel %vm433, %v421, 0
    %440 = vmatprep.subr.bf16.mxu0 0
    %441 = vmatpush1.bf16.xpose.msra.mxu0 %v438
    %442 = vmatprep.subr.bf16.mxu0 0
    %443 = vmatpush1.bf16.xpose.msra.mxu0 0
    %444 = vmatprep.subr.bf16.mxu0 0
    %445 = vmatpush1.bf16.xpose.msra.mxu0 0
    %446 = vmatprep.subr.bf16.mxu0 0
    %447 = vmatpush1.bf16.xpose.msra.mxu0 0
    %448 = vmatprep.subr.bf16.mxu0 0
    %449 = vmatpush1.bf16.xpose.msra.mxu0 0
    %450 = vmatprep.subr.bf16.mxu0 0
    %451 = vmatpush1.bf16.xpose.msra.mxu0 0
    %452 = vmatprep.subr.bf16.mxu0 0
    %453 = vmatpush1.bf16.xpose.msra.mxu0 0
    %454 = vmatprep.subr.bf16.mxu0 0
    %455 = vmatpush1.bf16.xpose.msra.mxu0 0
    %456 = vmatprep.subr.bf16.mxu0 0
    %457 = vmatpush1.bf16.xpose.msra.mxu0 0
    %458 = vmatprep.subr.bf16.mxu0 0
    %459 = vmatpush1.bf16.xpose.msra.mxu0 0
    %460 = vmatprep.subr.bf16.mxu0 0
    %461 = vmatpush1.bf16.xpose.msra.mxu0 0
    %462 = vmatprep.subr.bf16.mxu0 0
    %463 = vmatpush1.bf16.xpose.msra.mxu0 0
    %464 = vmatprep.subr.bf16.mxu0 0
    %465 = vmatpush1.bf16.xpose.msra.mxu0 0
    %466 = vmatprep.subr.bf16.mxu0 0
    %467 = vmatpush1.bf16.xpose.msra.mxu0 0
    %468 = vmatprep.subr.bf16.mxu0 0
    %469 = vmatpush1.bf16.xpose.msra.mxu0 0
    %470 = vmatprep.subr.bf16.mxu0 0
    %471 = vmatpush1.bf16.xpose.msra.mxu0 0
    %472 = vmatprep.mubr.bf16.mxu0 0
    %473 = vmatmul.mubr.bf16.gmra.mrb[0].mxu0 %v435
    %v474 = vpop.f32.mrb[0].mxu0
    %v475 = vadd.f32 0.0, %v474
    %v476 = vpop.f32.mrb[0].mxu0
    %v477 = vpop.f32.mrb[0].mxu0
    %v478 = vadd.f32 0.0, %v477
    %v479 = vpop.f32.mrb[0].mxu0
    %480 = vdwg.mxu0
    %v482 = vsel %vm433, %v420, 0
    %v485 = vsel %vm433, %v422, 0
    %487 = vmatprep.subr.bf16.mxu0 0
    %488 = vmatpush1.bf16.xpose.msra.mxu0 %v485
    %489 = vmatprep.subr.bf16.mxu0 0
    %490 = vmatpush1.bf16.xpose.msra.mxu0 0
    %491 = vmatprep.subr.bf16.mxu0 0
    %492 = vmatpush1.bf16.xpose.msra.mxu0 0
    %493 = vmatprep.subr.bf16.mxu0 0
    %494 = vmatpush1.bf16.xpose.msra.mxu0 0
    %495 = vmatprep.subr.bf16.mxu0 0
    %496 = vmatpush1.bf16.xpose.msra.mxu0 0
    %497 = vmatprep.subr.bf16.mxu0 0
    %498 = vmatpush1.bf16.xpose.msra.mxu0 0
    %499 = vmatprep.subr.bf16.mxu0 0
    %500 = vmatpush1.bf16.xpose.msra.mxu0 0
    %501 = vmatprep.subr.bf16.mxu0 0
    %502 = vmatpush1.bf16.xpose.msra.mxu0 0
    %503 = vmatprep.subr.bf16.mxu0 0
    %504 = vmatpush1.bf16.xpose.msra.mxu0 0
    %505 = vmatprep.subr.bf16.mxu0 0
    %506 = vmatpush1.bf16.xpose.msra.mxu0 0
    %507 = vmatprep.subr.bf16.mxu0 0
    %508 = vmatpush1.bf16.xpose.msra.mxu0 0
    %509 = vmatprep.subr.bf16.mxu0 0
    %510 = vmatpush1.bf16.xpose.msra.mxu0 0
    %511 = vmatprep.subr.bf16.mxu0 0
    %512 = vmatpush1.bf16.xpose.msra.mxu0 0
    %513 = vmatprep.subr.bf16.mxu0 0
    %514 = vmatpush1.bf16.xpose.msra.mxu0 0
    %515 = vmatprep.subr.bf16.mxu0 0
    %516 = vmatpush1.bf16.xpose.msra.mxu0 0
    %517 = vmatprep.subr.bf16.mxu0 0
    %518 = vmatpush1.bf16.xpose.msra.mxu0 0
    %519 = vmatprep.mubr.bf16.mxu0 0
    %520 = vmatmul.mubr.bf16.gmra.mrb[0].mxu0 %v482
    %v521 = vpop.f32.mrb[0].mxu0
    %v522 = vadd.f32 0.0, %v521
    %v523 = vpop.f32.mrb[0].mxu0
    %v524 = vpop.f32.mrb[0].mxu0
    %v525 = vadd.f32 0.0, %v524
    %v526 = vpop.f32.mrb[0].mxu0
    %527 = vdwg.mxu0
    %v528 = vmul.f32 %v475, 0.17677669
    %v529 = vmul.f32 %v478, 0.17677669
    %v530 = vmul.f32 %v522, 0.17677669
    %v531 = vmul.f32 %v525, 0.17677669
    %v532 = vsel %vm429, -1e+09, %v528
    %v533 = vsel %vm430, -1e+09, %v529
    %v534 = vsel %vm431, -1e+09, %v530
    %v535 = vsel %vm432, -1e+09, %v531
    %vm536 = vcmask 130048
    %v537 = vsel %vm536, %v532, -inf
    %538 = vmax.xlane.f32.xlu0 %v537
    %v539 = vpop.xlane.xlu0 %538
    %v540 = vsel %vm536, %v533, -inf
    %541 = vmax.xlane.f32.xlu0 %v540
    %v542 = vpop.xlane.xlu0 %541
    %v543 = vsel %vm536, %v534, -inf
    %544 = vmax.xlane.f32.xlu0 %v543
    %v545 = vpop.xlane.xlu0 %544
    %v546 = vsel %vm536, %v535, -inf
    %547 = vmax.xlane.f32.xlu0 %v546
    %v548 = vpop.xlane.xlu0 %547
    %v549 = vsub.f32 %v532, %v539
    %v550 = vsub.f32 %v533, %v542
    %v551 = vsub.f32 %v534, %v545
    %v552 = vsub.f32 %v535, %v548
    %v553 = vmul.f32 %v549, 1.442695
    %v554 = vpow.pop %v553
    %v555 = vmul.f32 %v550, 1.442695
    %v556 = vpow.pop %v555
    %v557 = vmul.f32 %v551, 1.442695
    %v558 = vpow.pop %v557
    %v559 = vmul.f32 %v552, 1.442695
    %v560 = vpow.pop %v559
    %v561 = vsel %vm536, %v554, 0.0
    %562 = vadd.xlane.f32.xlu0 %v561
    %v563 = vpop.xlane.xlu0 %562
    %v564 = vsel %vm536, %v556, 0.0
    %565 = vadd.xlane.f32.xlu0 %v564
    %v566 = vpop.xlane.xlu0 %565
    %v567 = vsel %vm536, %v558, 0.0
    %568 = vadd.xlane.f32.xlu0 %v567
    %v569 = vpop.xlane.xlu0 %568
    %v570 = vsel %vm536, %v560, 0.0
    %571 = vadd.xlane.f32.xlu0 %v570
    %v572 = vpop.xlane.xlu0 %571
    %v573 = vrcp.pop %v563
    %v574 = vrcp.pop %v566
    %v575 = vrcp.pop %v569
    %v576 = vrcp.pop %v572
    %v577 = vmul.f32 %v554, %v573
    %v578 = vmul.f32 %v556, %v574
    %v579 = vmul.f32 %v558, %v575
    %v580 = vmul.f32 %v560, %v576
    %581 = vst.msk [vmem:[#allocation14] sm:$0xff] %vm536, %v577
    %582 = vst.msk [vmem:[#allocation14 + $0x8] sm:$0xff] %vm536, %v578
    %583 = vst.msk [vmem:[#allocation14 + $0x40] sm:$0xff] %vm536, %v579
    %584 = vst.msk [vmem:[#allocation14 + $0x48] sm:$0xff] %vm536, %v580
    %v585 = vpack.c.bf16 %v578, %v577
    %v586 = vpack.c.bf16 %v580, %v579
    %v588 = vsel %vm536, %v585, 0
    %590 = vmatprep.subr.bf16.mxu0 0
    %591 = vmatpush1.bf16.msra.mxu0 %v423
    %592 = vmatprep.subr.bf16.mxu0 0
    %593 = vmatpush1.bf16.msra.mxu0 0
    %594 = vmatprep.subr.bf16.mxu0 0
    %595 = vmatpush1.bf16.msra.mxu0 0
    %596 = vmatprep.subr.bf16.mxu0 0
    %597 = vmatpush1.bf16.msra.mxu0 0
    %598 = vmatprep.subr.bf16.mxu0 0
    %599 = vmatpush1.bf16.msra.mxu0 0
    %600 = vmatprep.subr.bf16.mxu0 0
    %601 = vmatpush1.bf16.msra.mxu0 0
    %602 = vmatprep.subr.bf16.mxu0 0
    %603 = vmatpush1.bf16.msra.mxu0 0
    %604 = vmatprep.subr.bf16.mxu0 0
    %605 = vmatpush1.bf16.msra.mxu0 0
    %606 = vmatprep.subr.bf16.mxu0 0
    %607 = vmatpush1.bf16.msra.mxu0 0
    %608 = vmatprep.subr.bf16.mxu0 0
    %609 = vmatpush1.bf16.msra.mxu0 0
    %610 = vmatprep.subr.bf16.mxu0 0
    %611 = vmatpush1.bf16.msra.mxu0 0
    %612 = vmatprep.subr.bf16.mxu0 0
    %613 = vmatpush1.bf16.msra.mxu0 0
    %614 = vmatprep.subr.bf16.mxu0 0
    %615 = vmatpush1.bf16.msra.mxu0 0
    %616 = vmatprep.subr.bf16.mxu0 0
    %617 = vmatpush1.bf16.msra.mxu0 0
    %618 = vmatprep.subr.bf16.mxu0 0
    %619 = vmatpush1.bf16.msra.mxu0 0
    %620 = vmatprep.subr.bf16.mxu0 0
    %621 = vmatpush1.bf16.msra.mxu0 0
    %622 = vmatprep.mubr.bf16.mxu0 0
    %623 = vmatmul.mubr.bf16.gmra.mrb[0].mxu0 %v588
    %v624 = vpop.f32.mrb[0].mxu0
    %v625 = vadd.f32 0.0, %v624
    %v626 = vpop.f32.mrb[0].mxu0
    %v627 = vpop.f32.mrb[0].mxu0
    %v628 = vadd.f32 0.0, %v627
    %v629 = vpop.f32.mrb[0].mxu0
    %630 = vdwg.mxu0
    %v632 = vsel %vm536, %v586, 0
    %634 = vmatprep.subr.bf16.mxu0 0
    %635 = vmatpush1.bf16.msra.mxu0 %v424
    %636 = vmatprep.subr.bf16.mxu0 0
    %637 = vmatpush1.bf16.msra.mxu0 0
    %638 = vmatprep.subr.bf16.mxu0 0
    %639 = vmatpush1.bf16.msra.mxu0 0
    %640 = vmatprep.subr.bf16.mxu0 0
    %641 = vmatpush1.bf16.msra.mxu0 0
    %642 = vmatprep.subr.bf16.mxu0 0
    %643 = vmatpush1.bf16.msra.mxu0 0
    %644 = vmatprep.subr.bf16.mxu0 0
    %645 = vmatpush1.bf16.msra.mxu0 0
    %646 = vmatprep.subr.bf16.mxu0 0
    %647 = vmatpush1.bf16.msra.mxu0 0
    %648 = vmatprep.subr.bf16.mxu0 0
    %649 = vmatpush1.bf16.msra.mxu0 0
    %650 = vmatprep.subr.bf16.mxu0 0
    %651 = vmatpush1.bf16.msra.mxu0 0
    %652 = vmatprep.subr.bf16.mxu0 0
    %653 = vmatpush1.bf16.msra.mxu0 0
    %654 = vmatprep.subr.bf16.mxu0 0
    %655 = vmatpush1.bf16.msra.mxu0 0
    %656 = vmatprep.subr.bf16.mxu0 0
    %657 = vmatpush1.bf16.msra.mxu0 0
    %658 = vmatprep.subr.bf16.mxu0 0
    %659 = vmatpush1.bf16.msra.mxu0 0
    %660 = vmatprep.subr.bf16.mxu0 0
    %661 = vmatpush1.bf16.msra.mxu0 0
    %662 = vmatprep.subr.bf16.mxu0 0
    %663 = vmatpush1.bf16.msra.mxu0 0
    %664 = vmatprep.subr.bf16.mxu0 0
    %665 = vmatpush1.bf16.msra.mxu0 0
    %666 = vmatprep.mubr.bf16.mxu0 0
    %667 = vmatmul.mubr.bf16.gmra.mrb[0].mxu0 %v632
    %v668 = vpop.f32.mrb[0].mxu0
    %v669 = vadd.f32 0.0, %v668
    %v670 = vpop.f32.mrb[0].mxu0
    %v671 = vpop.f32.mrb[0].mxu0
    %v672 = vadd.f32 0.0, %v671
    %v673 = vpop.f32.mrb[0].mxu0
    %674 = vdwg.mxu0
    %v675 = vpack.c.bf16 %v628, %v625
    %v676 = vpack.c.bf16 %v672, %v669
    %v677 = vld [vmem:[#allocation8] sm:$0xf]
    %v678 = vld [vmem:[#allocation8 + $0x4] sm:$0xf]
    %v679 = vld [vmem:[#allocation8 + $0x8] sm:$0xf]
    %v680 = vld [vmem:[#allocation8 + $0xc] sm:$0xf]
    %682 = vrot.lane.b32.xlu0 %v419, 96
    %v683 = vpop.permute.xlu0 %682
    %685 = vrot.lane.b32.xlu0 %v421, 96
    %v686 = vpop.permute.xlu0 %685
    %v688 = vsel %vm433, %v683, 0
    %v691 = vsel %vm433, %v686, 0
    %693 = vmatprep.subr.bf16.mxu0 0
    %694 = vmatpush1.bf16.xpose.msra.mxu0 %v691
    %695 = vmatprep.subr.bf16.mxu0 0
    %696 = vmatpush1.bf16.xpose.msra.mxu0 0
    %697 = vmatprep.subr.bf16.mxu0 0
    %698 = vmatpush1.bf16.xpose.msra.mxu0 0
    %699 = vmatprep.subr.bf16.mxu0 0
    %700 = vmatpush1.bf16.xpose.msra.mxu0 0
    %701 = vmatprep.subr.bf16.mxu0 0
    %702 = vmatpush1.bf16.xpose.msra.mxu0 0
    %703 = vmatprep.subr.bf16.mxu0 0
    %704 = vmatpush1.bf16.xpose.msra.mxu0 0
    %705 = vmatprep.subr.bf16.mxu0 0
    %706 = vmatpush1.bf16.xpose.msra.mxu0 0
    %707 = vmatprep.subr.bf16.mxu0 0
    %708 = vmatpush1.bf16.xpose.msra.mxu0 0
    %709 = vmatprep.subr.bf16.mxu0 0
    %710 = vmatpush1.bf16.xpose.msra.mxu0 0
    %711 = vmatprep.subr.bf16.mxu0 0
    %712 = vmatpush1.bf16.xpose.msra.mxu0 0
    %713 = vmatprep.subr.bf16.mxu0 0
    %714 = vmatpush1.bf16.xpose.msra.mxu0 0
    %715 = vmatprep.subr.bf16.mxu0 0
    %716 = vmatpush1.bf16.xpose.msra.mxu0 0
    %717 = vmatprep.subr.bf16.mxu0 0
    %718 = vmatpush1.bf16.xpose.msra.mxu0 0
    %719 = vmatprep.subr.bf16.mxu0 0
    %720 = vmatpush1.bf16.xpose.msra.mxu0 0
    %721 = vmatprep.subr.bf16.mxu0 0
    %722 = vmatpush1.bf16.xpose.msra.mxu0 0
    %723 = vmatprep.subr.bf16.mxu0 0
    %724 = vmatpush1.bf16.xpose.msra.mxu0 0
    %725 = vmatprep.mubr.bf16.mxu0 0
    %726 = vmatmul.mubr.bf16.gmra.mrb[0].mxu0 %v688
    %v727 = vpop.f32.mrb[0].mxu0
    %v728 = vadd.f32 0.0, %v727
    %v729 = vpop.f32.mrb[0].mxu0
    %v730 = vpop.f32.mrb[0].mxu0
    %v731 = vadd.f32 0.0, %v730
    %v732 = vpop.f32.mrb[0].mxu0
    %733 = vdwg.mxu0
    %735 = vrot.lane.b32.xlu0 %v420, 96
    %v736 = vpop.permute.xlu0 %735
    %738 = vrot.lane.b32.xlu0 %v422, 96
    %v739 = vpop.permute.xlu0 %738
    %v741 = vsel %vm433, %v736, 0
    %v744 = vsel %vm433, %v739, 0
    %746 = vmatprep.subr.bf16.mxu0 0
    %747 = vmatpush1.bf16.xpose.msra.mxu0 %v744
    %748 = vmatprep.subr.bf16.mxu0 0
    %749 = vmatpush1.bf16.xpose.msra.mxu0 0
    %750 = vmatprep.subr.bf16.mxu0 0
    %751 = vmatpush1.bf16.xpose.msra.mxu0 0
    %752 = vmatprep.subr.bf16.mxu0 0
    %753 = vmatpush1.bf16.xpose.msra.mxu0 0
    %754 = vmatprep.subr.bf16.mxu0 0
    %755 = vmatpush1.bf16.xpose.msra.mxu0 0
    %756 = vmatprep.subr.bf16.mxu0 0
    %757 = vmatpush1.bf16.xpose.msra.mxu0 0
    %758 = vmatprep.subr.bf16.mxu0 0
    %759 = vmatpush1.bf16.xpose.msra.mxu0 0
    %760 = vmatprep.subr.bf16.mxu0 0
    %761 = vmatpush1.bf16.xpose.msra.mxu0 0
    %762 = vmatprep.subr.bf16.mxu0 0
    %763 = vmatpush1.bf16.xpose.msra.mxu0 0
    %764 = vmatprep.subr.bf16.mxu0 0
    %765 = vmatpush1.bf16.xpose.msra.mxu0 0
    %766 = vmatprep.subr.bf16.mxu0 0
    %767 = vmatpush1.bf16.xpose.msra.mxu0 0
    %768 = vmatprep.subr.bf16.mxu0 0
    %769 = vmatpush1.bf16.xpose.msra.mxu0 0
    %770 = vmatprep.subr.bf16.mxu0 0
    %771 = vmatpush1.bf16.xpose.msra.mxu0 0
    %772 = vmatprep.subr.bf16.mxu0 0
    %773 = vmatpush1.bf16.xpose.msra.mxu0 0
    %774 = vmatprep.subr.bf16.mxu0 0
    %775 = vmatpush1.bf16.xpose.msra.mxu0 0
    %776 = vmatprep.subr.bf16.mxu0 0
    %777 = vmatpush1.bf16.xpose.msra.mxu0 0
    %778 = vmatprep.mubr.bf16.mxu0 0
    %779 = vmatmul.mubr.bf16.gmra.mrb[0].mxu0 %v741
    %v780 = vpop.f32.mrb[0].mxu0
    %v781 = vadd.f32 0.0, %v780
    %v782 = vpop.f32.mrb[0].mxu0
    %v783 = vpop.f32.mrb[0].mxu0
    %v784 = vadd.f32 0.0, %v783
    %v785 = vpop.f32.mrb[0].mxu0
    %786 = vdwg.mxu0
    %v787 = vmul.f32 %v728, 0.17677669
    %v788 = vmul.f32 %v731, 0.17677669
    %v789 = vmul.f32 %v781, 0.17677669
    %v790 = vmul.f32 %v784, 0.17677669
    %v791 = vsel %vm429, -1e+09, %v787
    %v792 = vsel %vm430, -1e+09, %v788
    %v793 = vsel %vm431, -1e+09, %v789
    %v794 = vsel %vm432, -1e+09, %v790
    %v795 = vsel %vm536, %v791, -inf
    %796 = vmax.xlane.f32.xlu0 %v795
    %v797 = vpop.xlane.xlu0 %796
    %v798 = vsel %vm536, %v792, -inf
    %799 = vmax.xlane.f32.xlu0 %v798
    %v800 = vpop.xlane.xlu0 %799
    %v801 = vsel %vm536, %v793, -inf
    %802 = vmax.xlane.f32.xlu0 %v801
    %v803 = vpop.xlane.xlu0 %802
    %v804 = vsel %vm536, %v794, -inf
    %805 = vmax.xlane.f32.xlu0 %v804
    %v806 = vpop.xlane.xlu0 %805
    %v807 = vsub.f32 %v791, %v797
    %v808 = vsub.f32 %v792, %v800
    %v809 = vsub.f32 %v793, %v803
    %v810 = vsub.f32 %v794, %v806
    %v811 = vmul.f32 %v807, 1.442695
    %v812 = vpow.pop %v811
    %v813 = vmul.f32 %v808, 1.442695
    %v814 = vpow.pop %v813
    %v815 = vmul.f32 %v809, 1.442695
    %v816 = vpow.pop %v815
    %v817 = vmul.f32 %v810, 1.442695
    %v818 = vpow.pop %v817
    %v819 = vsel %vm536, %v812, 0.0
    %820 = vadd.xlane.f32.xlu0 %v819
    %v821 = vpop.xlane.xlu0 %820
    %v822 = vsel %vm536, %v814, 0.0
    %823 = vadd.xlane.f32.xlu0 %v822
    %v824 = vpop.xlane.xlu0 %823
    %v825 = vsel %vm536, %v816, 0.0
    %826 = vadd.xlane.f32.xlu0 %v825
    %v827 = vpop.xlane.xlu0 %826
    %v828 = vsel %vm536, %v818, 0.0
    %829 = vadd.xlane.f32.xlu0 %v828
    %v830 = vpop.xlane.xlu0 %829
    %v831 = vrcp.pop %v821
    %v832 = vrcp.pop %v824
    %v833 = vrcp.pop %v827
    %v834 = vrcp.pop %v830
    %v835 = vmul.f32 %v812, %v831
    %v836 = vmul.f32 %v814, %v832
    %v837 = vmul.f32 %v816, %v833
    %v838 = vmul.f32 %v818, %v834
    %s839 = scalar_lea.vmem [#allocation14], 16
    %840 = vst.msk [vmem:[%s839] sm:$0xff] %vm536, %v835
    %841 = vst.msk [vmem:[%s839 + $0x8] sm:$0xff] %vm536, %v836
    %842 = vst.msk [vmem:[%s839 + $0x40] sm:$0xff] %vm536, %v837
    %843 = vst.msk [vmem:[%s839 + $0x48] sm:$0xff] %vm536, %v838
    %v844 = vpack.c.bf16 %v836, %v835
    %v845 = vpack.c.bf16 %v838, %v837
    %847 = vrot.lane.b32.xlu0 %v423, 96
    %v848 = vpop.permute.xlu0 %847
    %v851 = vsel %vm536, %v844, 0
    %853 = vmatprep.subr.bf16.mxu0 0
    %854 = vmatpush1.bf16.msra.mxu0 %v848
    %855 = vmatprep.subr.bf16.mxu0 0
    %856 = vmatpush1.bf16.msra.mxu0 0
    %857 = vmatprep.subr.bf16.mxu0 0
    %858 = vmatpush1.bf16.msra.mxu0 0
    %859 = vmatprep.subr.bf16.mxu0 0
    %860 = vmatpush1.bf16.msra.mxu0 0
    %861 = vmatprep.subr.bf16.mxu0 0
    %862 = vmatpush1.bf16.msra.mxu0 0
    %863 = vmatprep.subr.bf16.mxu0 0
    %864 = vmatpush1.bf16.msra.mxu0 0
    %865 = vmatprep.subr.bf16.mxu0 0
    %866 = vmatpush1.bf16.msra.mxu0 0
    %867 = vmatprep.subr.bf16.mxu0 0
    %868 = vmatpush1.bf16.msra.mxu0 0
    %869 = vmatprep.subr.bf16.mxu0 0
    %870 = vmatpush1.bf16.msra.mxu0 0
    %871 = vmatprep.subr.bf16.mxu0 0
    %872 = vmatpush1.bf16.msra.mxu0 0
    %873 = vmatprep.subr.bf16.mxu0 0
    %874 = vmatpush1.bf16.msra.mxu0 0
    %875 = vmatprep.subr.bf16.mxu0 0
    %876 = vmatpush1.bf16.msra.mxu0 0
    %877 = vmatprep.subr.bf16.mxu0 0
    %878 = vmatpush1.bf16.msra.mxu0 0
    %879 = vmatprep.subr.bf16.mxu0 0
    %880 = vmatpush1.bf16.msra.mxu0 0
    %881 = vmatprep.subr.bf16.mxu0 0
    %882 = vmatpush1.bf16.msra.mxu0 0
    %883 = vmatprep.subr.bf16.mxu0 0
    %884 = vmatpush1.bf16.msra.mxu0 0
    %885 = vmatprep.mubr.bf16.mxu0 0
    %886 = vmatmul.mubr.bf16.gmra.mrb[0].mxu0 %v851
    %v887 = vpop.f32.mrb[0].mxu0
    %v888 = vadd.f32 0.0, %v887
    %v889 = vpop.f32.mrb[0].mxu0
    %v890 = vpop.f32.mrb[0].mxu0
    %v891 = vadd.f32 0.0, %v890
    %v892 = vpop.f32.mrb[0].mxu0
    %893 = vdwg.mxu0
    %895 = vrot.lane.b32.xlu0 %v424, 96
    %v896 = vpop.permute.xlu0 %895
    %v899 = vsel %vm536, %v845, 0
    %901 = vmatprep.subr.bf16.mxu0 0
    %902 = vmatpush1.bf16.msra.mxu0 %v896
    %903 = vmatprep.subr.bf16.mxu0 0
    %904 = vmatpush1.bf16.msra.mxu0 0
    %905 = vmatprep.subr.bf16.mxu0 0
    %906 = vmatpush1.bf16.msra.mxu0 0
    %907 = vmatprep.subr.bf16.mxu0 0
    %908 = vmatpush1.bf16.msra.mxu0 0
    %909 = vmatprep.subr.bf16.mxu0 0
    %910 = vmatpush1.bf16.msra.mxu0 0
    %911 = vmatprep.subr.bf16.mxu0 0
    %912 = vmatpush1.bf16.msra.mxu0 0
    %913 = vmatprep.subr.bf16.mxu0 0
    %914 = vmatpush1.bf16.msra.mxu0 0
    %915 = vmatprep.subr.bf16.mxu0 0
    %916 = vmatpush1.bf16.msra.mxu0 0
    %917 = vmatprep.subr.bf16.mxu0 0
    %918 = vmatpush1.bf16.msra.mxu0 0
    %919 = vmatprep.subr.bf16.mxu0 0
    %920 = vmatpush1.bf16.msra.mxu0 0
    %921 = vmatprep.subr.bf16.mxu0 0
    %922 = vmatpush1.bf16.msra.mxu0 0
    %923 = vmatprep.subr.bf16.mxu0 0
    %924 = vmatpush1.bf16.msra.mxu0 0
    %925 = vmatprep.subr.bf16.mxu0 0
    %926 = vmatpush1.bf16.msra.mxu0 0
    %927 = vmatprep.subr.bf16.mxu0 0
    %928 = vmatpush1.bf16.msra.mxu0 0
    %929 = vmatprep.subr.bf16.mxu0 0
    %930 = vmatpush1.bf16.msra.mxu0 0
    %931 = vmatprep.subr.bf16.mxu0 0
    %932 = vmatpush1.bf16.msra.mxu0 0
    %933 = vmatprep.mubr.bf16.mxu0 0
    %934 = vmatmul.mubr.bf16.gmra.mrb[0].mxu0 %v899
    %v935 = vpop.f32.mrb[0].mxu0
    %v936 = vadd.f32 0.0, %v935
    %v937 = vpop.f32.mrb[0].mxu0
    %v938 = vpop.f32.mrb[0].mxu0
    %v939 = vadd.f32 0.0, %v938
    %v940 = vpop.f32.mrb[0].mxu0
    %941 = vdwg.mxu0
    %v942 = vpack.c.bf16 %v891, %v888
    %v943 = vpack.c.bf16 %v939, %v936
    %s944 = scalar_lea.vmem [#allocation8], 16
    %v945 = vld [vmem:[%s944] sm:$0xf]
    %v946 = vld [vmem:[%s944 + $0x4] sm:$0xf]
    %v947 = vld [vmem:[%s944 + $0x8] sm:$0xf]
    %v948 = vld [vmem:[%s944 + $0xc] sm:$0xf]
    %v953 = vunpack.c.l.b16 %v945
    %v954 = vunpack.c.l.b16 %v946
    %v955 = vunpack.c.l.b16 %v947
    %v956 = vunpack.c.l.b16 %v948
    %v957 = vpack.c.b16 %v954, %v953
    %v958 = vpack.c.b16 %v956, %v955
    %v962 = vsel %vm433, %v942, 0
    %v965 = vsel %vm433, %v943, 0
    %967 = vmatprep.subr.bf16.mxu0 0
    %968 = vmatpush1.bf16.msra.mxu0 %v957
    %969 = vmatprep.subr.bf16.mxu0 0
    %970 = vmatpush1.bf16.msra.mxu0 %v958
    %971 = vmatprep.subr.bf16.mxu0 0
    %972 = vmatpush1.bf16.msra.mxu0 0
    %973 = vmatprep.subr.bf16.mxu0 0
    %974 = vmatpush1.bf16.msra.mxu0 0
    %975 = vmatprep.subr.bf16.mxu0 0
    %976 = vmatpush1.bf16.msra.mxu0 0
    %977 = vmatprep.subr.bf16.mxu0 0
    %978 = vmatpush1.bf16.msra.mxu0 0
    %979 = vmatprep.subr.bf16.mxu0 0
    %980 = vmatpush1.bf16.msra.mxu0 0
    %981 = vmatprep.subr.bf16.mxu0 0
    %982 = vmatpush1.bf16.msra.mxu0 0
    %983 = vmatprep.subr.bf16.mxu0 0
    %984 = vmatpush1.bf16.msra.mxu0 0
    %985 = vmatprep.subr.bf16.mxu0 0
    %986 = vmatpush1.bf16.msra.mxu0 0
    %987 = vmatprep.subr.bf16.mxu0 0
    %988 = vmatpush1.bf16.msra.mxu0 0
    %989 = vmatprep.subr.bf16.mxu0 0
    %990 = vmatpush1.bf16.msra.mxu0 0
    %991 = vmatprep.subr.bf16.mxu0 0
    %992 = vmatpush1.bf16.msra.mxu0 0
    %993 = vmatprep.subr.bf16.mxu0 0
    %994 = vmatpush1.bf16.msra.mxu0 0
    %995 = vmatprep.subr.bf16.mxu0 0
    %996 = vmatpush1.bf16.msra.mxu0 0
    %997 = vmatprep.subr.bf16.mxu0 0
    %998 = vmatpush1.bf16.msra.mxu0 0
    %999 = vmatprep.mubr.bf16.mxu0 0
    %1000 = vmatmul.mubr.bf16.gmra.mrb[0].mxu0 %v962
    %v1001 = vpop.f32.mrb[0].mxu0
    %v1002 = vadd.f32 0.0, %v1001
    %v1003 = vpop.f32.mrb[0].mxu0
    %v1004 = vpop.f32.mrb[0].mxu0
    %v1005 = vadd.f32 0.0, %v1004
    %v1006 = vpop.f32.mrb[0].mxu0
    %1007 = vmatprep.mubr.bf16.mxu0 0
    %1008 = vmatmul.mubr.bf16.gmra.mrb[0].mxu0 %v965
    %v1009 = vpop.f32.mrb[0].mxu0
    %v1010 = vadd.f32 0.0, %v1009
    %v1011 = vpop.f32.mrb[0].mxu0
    %v1012 = vpop.f32.mrb[0].mxu0
    %v1013 = vadd.f32 0.0, %v1012
    %v1014 = vpop.f32.mrb[0].mxu0
    %1015 = vdwg.mxu0
    %v1020 = vunpack.c.l.b16 %v677
    %v1021 = vunpack.c.l.b16 %v678
    %v1022 = vunpack.c.l.b16 %v679
    %v1023 = vunpack.c.l.b16 %v680
    %v1024 = vpack.c.b16 %v1021, %v1020
    %v1025 = vpack.c.b16 %v1023, %v1022
    %v1029 = vsel %vm433, %v675, 0
    %v1032 = vsel %vm433, %v676, 0
    %1034 = vmatprep.subr.bf16.mxu0 0
    %1035 = vmatpush1.bf16.msra.mxu0 %v1024
    %1036 = vmatprep.subr.bf16.mxu0 0
    %1037 = vmatpush1.bf16.msra.mxu0 %v1025
    %1038 = vmatprep.subr.bf16.mxu0 0
    %1039 = vmatpush1.bf16.msra.mxu0 0
    %1040 = vmatprep.subr.bf16.mxu0 0
    %1041 = vmatpush1.bf16.msra.mxu0 0
    %1042 = vmatprep.subr.bf16.mxu0 0
    %1043 = vmatpush1.bf16.msra.mxu0 0
    %1044 = vmatprep.subr.bf16.mxu0 0
    %1045 = vmatpush1.bf16.msra.mxu0 0
    %1046 = vmatprep.subr.bf16.mxu0 0
    %1047 = vmatpush1.bf16.msra.mxu0 0
    %1048 = vmatprep.subr.bf16.mxu0 0
    %1049 = vmatpush1.bf16.msra.mxu0 0
    %1050 = vmatprep.subr.bf16.mxu0 0
    %1051 = vmatpush1.bf16.msra.mxu0 0
    %1052 = vmatprep.subr.bf16.mxu0 0
    %1053 = vmatpush1.bf16.msra.mxu0 0
    %1054 = vmatprep.subr.bf16.mxu0 0
    %1055 = vmatpush1.bf16.msra.mxu0 0
    %1056 = vmatprep.subr.bf16.mxu0 0
    %1057 = vmatpush1.bf16.msra.mxu0 0
    %1058 = vmatprep.subr.bf16.mxu0 0
    %1059 = vmatpush1.bf16.msra.mxu0 0
    %1060 = vmatprep.subr.bf16.mxu0 0
    %1061 = vmatpush1.bf16.msra.mxu0 0
    %1062 = vmatprep.subr.bf16.mxu0 0
    %1063 = vmatpush1.bf16.msra.mxu0 0
    %1064 = vmatprep.subr.bf16.mxu0 0
    %1065 = vmatpush1.bf16.msra.mxu0 0
    %1066 = vmatprep.mubr.bf16.mxu0 0
    %1067 = vmatmul.mubr.bf16.gmra.mrb[0].mxu0 %v1029
    %v1068 = vpop.f32.mrb[0].mxu0
    %v1069 = vadd.f32 %v1002, %v1068
    %v1070 = vpop.f32.mrb[0].mxu0
    %v1071 = vpop.f32.mrb[0].mxu0
    %v1072 = vadd.f32 %v1005, %v1071
    %v1073 = vpop.f32.mrb[0].mxu0
    %1074 = vmatprep.mubr.bf16.mxu0 0
    %1075 = vmatmul.mubr.bf16.gmra.mrb[0].mxu0 %v1032
    %v1076 = vpop.f32.mrb[0].mxu0
    %v1077 = vadd.f32 %v1010, %v1076
    %v1078 = vpop.f32.mrb[0].mxu0
    %v1079 = vpop.f32.mrb[0].mxu0
    %v1080 = vadd.f32 %v1013, %v1079
    %v1081 = vpop.f32.mrb[0].mxu0
    %1082 = vdwg.mxu0
    %1083 = vrot.lane.b32.xlu0 %v419, 64
    %v1084 = vpop.permute.xlu0 %1083
    %1085 = vrot.lane.b32.xlu0 %v421, 64
    %v1086 = vpop.permute.xlu0 %1085
    %v1088 = vsel %vm433, %v1084, 0
    %v1091 = vsel %vm433, %v1086, 0
    %1093 = vmatprep.subr.bf16.mxu0 0
    %1094 = vmatpush1.bf16.xpose.msra.mxu0 %v1091
    %1095 = vmatprep.subr.bf16.mxu0 0
    %1096 = vmatpush1.bf16.xpose.msra.mxu0 0
    %1097 = vmatprep.subr.bf16.mxu0 0
    %1098 = vmatpush1.bf16.xpose.msra.mxu0 0
    %1099 = vmatprep.subr.bf16.mxu0 0
    %1100 = vmatpush1.bf16.xpose.msra.mxu0 0
    %1101 = vmatprep.subr.bf16.mxu0 0
    %1102 = vmatpush1.bf16.xpose.msra.mxu0 0
    %1103 = vmatprep.subr.bf16.mxu0 0
    %1104 = vmatpush1.bf16.xpose.msra.mxu0 0
    %1105 = vmatprep.subr.bf16.mxu0 0
    %1106 = vmatpush1.bf16.xpose.msra.mxu0 0
    %1107 = vmatprep.subr.bf16.mxu0 0
    %1108 = vmatpush1.bf16.xpose.msra.mxu0 0
    %1109 = vmatprep.subr.bf16.mxu0 0
    %1110 = vmatpush1.bf16.xpose.msra.mxu0 0
    %1111 = vmatprep.subr.bf16.mxu0 0
    %1112 = vmatpush1.bf16.xpose.msra.mxu0 0
    %1113 = vmatprep.subr.bf16.mxu0 0
    %1114 = vmatpush1.bf16.xpose.msra.mxu0 0
    %1115 = vmatprep.subr.bf16.mxu0 0
    %1116 = vmatpush1.bf16.xpose.msra.mxu0 0
    %1117 = vmatprep.subr.bf16.mxu0 0
    %1118 = vmatpush1.bf16.xpose.msra.mxu0 0
    %1119 = vmatprep.subr.bf16.mxu0 0
    %1120 = vmatpush1.bf16.xpose.msra.mxu0 0
    %1121 = vmatprep.subr.bf16.mxu0 0
    %1122 = vmatpush1.bf16.xpose.msra.mxu0 0
    %1123 = vmatprep.subr.bf16.mxu0 0
    %1124 = vmatpush1.bf16.xpose.msra.mxu0 0
    %1125 = vmatprep.mubr.bf16.mxu0 0
    %1126 = vmatmul.mubr.bf16.gmra.mrb[0].mxu0 %v1088
    %v1127 = vpop.f32.mrb[0].mxu0
    %v1128 = vadd.f32 0.0, %v1127
    %v1129 = vpop.f32.mrb[0].mxu0
    %v1130 = vpop.f32.mrb[0].mxu0
    %v1131 = vadd.f32 0.0, %v1130
    %v1132 = vpop.f32.mrb[0].mxu0
    %1133 = vdwg.mxu0
    %1134 = vrot.lane.b32.xlu0 %v420, 64
    %v1135 = vpop.permute.xlu0 %1134
    %1136 = vrot.lane.b32.xlu0 %v422, 64
    %v1137 = vpop.permute.xlu0 %1136
    %v1139 = vsel %vm433, %v1135, 0
    %v1142 = vsel %vm433, %v1137, 0
    %1144 = vmatprep.subr.bf16.mxu0 0
    %1145 = vmatpush1.bf16.xpose.msra.mxu0 %v1142
    %1146 = vmatprep.subr.bf16.mxu0 0
    %1147 = vmatpush1.bf16.xpose.msra.mxu0 0
    %1148 = vmatprep.subr.bf16.mxu0 0
    %1149 = vmatpush1.bf16.xpose.msra.mxu0 0
    %1150 = vmatprep.subr.bf16.mxu0 0
    %1151 = vmatpush1.bf16.xpose.msra.mxu0 0
    %1152 = vmatprep.subr.bf16.mxu0 0
    %1153 = vmatpush1.bf16.xpose.msra.mxu0 0
    %1154 = vmatprep.subr.bf16.mxu0 0
    %1155 = vmatpush1.bf16.xpose.msra.mxu0 0
    %1156 = vmatprep.subr.bf16.mxu0 0
    %1157 = vmatpush1.bf16.xpose.msra.mxu0 0
    %1158 = vmatprep.subr.bf16.mxu0 0
    %1159 = vmatpush1.bf16.xpose.msra.mxu0 0
    %1160 = vmatprep.subr.bf16.mxu0 0
    %1161 = vmatpush1.bf16.xpose.msra.mxu0 0
    %1162 = vmatprep.subr.bf16.mxu0 0
    %1163 = vmatpush1.bf16.xpose.msra.mxu0 0
    %1164 = vmatprep.subr.bf16.mxu0 0
    %1165 = vmatpush1.bf16.xpose.msra.mxu0 0
    %1166 = vmatprep.subr.bf16.mxu0 0
    %1167 = vmatpush1.bf16.xpose.msra.mxu0 0
    %1168 = vmatprep.subr.bf16.mxu0 0
    %1169 = vmatpush1.bf16.xpose.msra.mxu0 0
    %1170 = vmatprep.subr.bf16.mxu0 0
    %1171 = vmatpush1.bf16.xpose.msra.mxu0 0
    %1172 = vmatprep.subr.bf16.mxu0 0
    %1173 = vmatpush1.bf16.xpose.msra.mxu0 0
    %1174 = vmatprep.subr.bf16.mxu0 0
    %1175 = vmatpush1.bf16.xpose.msra.mxu0 0
    %1176 = vmatprep.mubr.bf16.mxu0 0
    %1177 = vmatmul.mubr.bf16.gmra.mrb[0].mxu0 %v1139
    %v1178 = vpop.f32.mrb[0].mxu0
    %v1179 = vadd.f32 0.0, %v1178
    %v1180 = vpop.f32.mrb[0].mxu0
    %v1181 = vpop.f32.mrb[0].mxu0
    %v1182 = vadd.f32 0.0, %v1181
    %v1183 = vpop.f32.mrb[0].mxu0
    %1184 = vdwg.mxu0
    %v1185 = vmul.f32 %v1128, 0.17677669
    %v1186 = vmul.f32 %v1131, 0.17677669
    %v1187 = vmul.f32 %v1179, 0.17677669
    %v1188 = vmul.f32 %v1182, 0.17677669
    %v1189 = vsel %vm429, -1e+09, %v1185
    %v1190 = vsel %vm430, -1e+09, %v1186
    %v1191 = vsel %vm431, -1e+09, %v1187
    %v1192 = vsel %vm432, -1e+09, %v1188
    %v1193 = vsel %vm536, %v1189, -inf
    %1194 = vmax.xlane.f32.xlu0 %v1193
    %v1195 = vpop.xlane.xlu0 %1194
    %v1196 = vsel %vm536, %v1190, -inf
    %1197 = vmax.xlane.f32.xlu0 %v1196
    %v1198 = vpop.xlane.xlu0 %1197
    %v1199 = vsel %vm536, %v1191, -inf
    %1200 = vmax.xlane.f32.xlu0 %v1199
    %v1201 = vpop.xlane.xlu0 %1200
    %v1202 = vsel %vm536, %v1192, -inf
    %1203 = vmax.xlane.f32.xlu0 %v1202
    %v1204 = vpop.xlane.xlu0 %1203
    %v1205 = vsub.f32 %v1189, %v1195
    %v1206 = vsub.f32 %v1190, %v1198
    %v1207 = vsub.f32 %v1191, %v1201
    %v1208 = vsub.f32 %v1192, %v1204
    %v1209 = vmul.f32 %v1205, 1.442695
    %v1210 = vpow.pop %v1209
    %v1211 = vmul.f32 %v1206, 1.442695
    %v1212 = vpow.pop %v1211
    %v1213 = vmul.f32 %v1207, 1.442695
    %v1214 = vpow.pop %v1213
    %v1215 = vmul.f32 %v1208, 1.442695
    %v1216 = vpow.pop %v1215
    %v1217 = vsel %vm536, %v1210, 0.0
    %1218 = vadd.xlane.f32.xlu0 %v1217
    %v1219 = vpop.xlane.xlu0 %1218
    %v1220 = vsel %vm536, %v1212, 0.0
    %1221 = vadd.xlane.f32.xlu0 %v1220
    %v1222 = vpop.xlane.xlu0 %1221
    %v1223 = vsel %vm536, %v1214, 0.0
    %1224 = vadd.xlane.f32.xlu0 %v1223
    %v1225 = vpop.xlane.xlu0 %1224
    %v1226 = vsel %vm536, %v1216, 0.0
    %1227 = vadd.xlane.f32.xlu0 %v1226
    %v1228 = vpop.xlane.xlu0 %1227
    %v1229 = vrcp.pop %v1219
    %v1230 = vrcp.pop %v1222
    %v1231 = vrcp.pop %v1225
    %v1232 = vrcp.pop %v1228
    %v1233 = vmul.f32 %v1210, %v1229
    %v1234 = vmul.f32 %v1212, %v1230
    %v1235 = vmul.f32 %v1214, %v1231
    %v1236 = vmul.f32 %v1216, %v1232
    %s1237 = scalar_lea.vmem [#allocation14], 32
    %1238 = vst.msk [vmem:[%s1237] sm:$0xff] %vm536, %v1233
    %1239 = vst.msk [vmem:[%s1237 + $0x8] sm:$0xff] %vm536, %v1234
    %1240 = vst.msk [vmem:[%s1237 + $0x40] sm:$0xff] %vm536, %v1235
    %1241 = vst.msk [vmem:[%s1237 + $0x48] sm:$0xff] %vm536, %v1236
    %v1242 = vpack.c.bf16 %v1234, %v1233
    %v1243 = vpack.c.bf16 %v1236, %v1235
    %1244 = vrot.lane.b32.xlu0 %v423, 64
    %v1245 = vpop.permute.xlu0 %1244
    %v1248 = vsel %vm536, %v1242, 0
    %1250 = vmatprep.subr.bf16.mxu0 0
    %1251 = vmatpush1.bf16.msra.mxu0 %v1245
    %1252 = vmatprep.subr.bf16.mxu0 0
    %1253 = vmatpush1.bf16.msra.mxu0 0
    %1254 = vmatprep.subr.bf16.mxu0 0
    %1255 = vmatpush1.bf16.msra.mxu0 0
    %1256 = vmatprep.subr.bf16.mxu0 0
    %1257 = vmatpush1.bf16.msra.mxu0 0
    %1258 = vmatprep.subr.bf16.mxu0 0
    %1259 = vmatpush1.bf16.msra.mxu0 0
    %1260 = vmatprep.subr.bf16.mxu0 0
    %1261 = vmatpush1.bf16.msra.mxu0 0
    %1262 = vmatprep.subr.bf16.mxu0 0
    %1263 = vmatpush1.bf16.msra.mxu0 0
    %1264 = vmatprep.subr.bf16.mxu0 0
    %1265 = vmatpush1.bf16.msra.mxu0 0
    %1266 = vmatprep.subr.bf16.mxu0 0
    %1267 = vmatpush1.bf16.msra.mxu0 0
    %1268 = vmatprep.subr.bf16.mxu0 0
    %1269 = vmatpush1.bf16.msra.mxu0 0
    %1270 = vmatprep.subr.bf16.mxu0 0
    %1271 = vmatpush1.bf16.msra.mxu0 0
    %1272 = vmatprep.subr.bf16.mxu0 0
    %1273 = vmatpush1.bf16.msra.mxu0 0
    %1274 = vmatprep.subr.bf16.mxu0 0
    %1275 = vmatpush1.bf16.msra.mxu0 0
    %1276 = vmatprep.subr.bf16.mxu0 0
    %1277 = vmatpush1.bf16.msra.mxu0 0
    %1278 = vmatprep.subr.bf16.mxu0 0
    %1279 = vmatpush1.bf16.msra.mxu0 0
    %1280 = vmatprep.subr.bf16.mxu0 0
    %1281 = vmatpush1.bf16.msra.mxu0 0
    %1282 = vmatprep.mubr.bf16.mxu0 0
    %1283 = vmatmul.mubr.bf16.gmra.mrb[0].mxu0 %v1248
    %v1284 = vpop.f32.mrb[0].mxu0
    %v1285 = vadd.f32 0.0, %v1284
    %v1286 = vpop.f32.mrb[0].mxu0
    %v1287 = vpop.f32.mrb[0].mxu0
    %v1288 = vadd.f32 0.0, %v1287
    %v1289 = vpop.f32.mrb[0].mxu0
    %1290 = vdwg.mxu0
    %1291 = vrot.lane.b32.xlu0 %v424, 64
    %v1292 = vpop.permute.xlu0 %1291
    %v1295 = vsel %vm536, %v1243, 0
    %1297 = vmatprep.subr.bf16.mxu0 0
    %1298 = vmatpush1.bf16.msra.mxu0 %v1292
    %1299 = vmatprep.subr.bf16.mxu0 0
    %1300 = vmatpush1.bf16.msra.mxu0 0
    %1301 = vmatprep.subr.bf16.mxu0 0
    %1302 = vmatpush1.bf16.msra.mxu0 0
    %1303 = vmatprep.subr.bf16.mxu0 0
    %1304 = vmatpush1.bf16.msra.mxu0 0
    %1305 = vmatprep.subr.bf16.mxu0 0
    %1306 = vmatpush1.bf16.msra.mxu0 0
    %1307 = vmatprep.subr.bf16.mxu0 0
    %1308 = vmatpush1.bf16.msra.mxu0 0
    %1309 = vmatprep.subr.bf16.mxu0 0
    %1310 = vmatpush1.bf16.msra.mxu0 0
    %1311 = vmatprep.subr.bf16.mxu0 0
    %1312 = vmatpush1.bf16.msra.mxu0 0
    %1313 = vmatprep.subr.bf16.mxu0 0
    %1314 = vmatpush1.bf16.msra.mxu0 0
    %1315 = vmatprep.subr.bf16.mxu0 0
    %1316 = vmatpush1.bf16.msra.mxu0 0
    %1317 = vmatprep.subr.bf16.mxu0 0
    %1318 = vmatpush1.bf16.msra.mxu0 0
    %1319 = vmatprep.subr.bf16.mxu0 0
    %1320 = vmatpush1.bf16.msra.mxu0 0
    %1321 = vmatprep.subr.bf16.mxu0 0
    %1322 = vmatpush1.bf16.msra.mxu0 0
    %1323 = vmatprep.subr.bf16.mxu0 0
    %1324 = vmatpush1.bf16.msra.mxu0 0
    %1325 = vmatprep.subr.bf16.mxu0 0
    %1326 = vmatpush1.bf16.msra.mxu0 0
    %1327 = vmatprep.subr.bf16.mxu0 0
    %1328 = vmatpush1.bf16.msra.mxu0 0
    %1329 = vmatprep.mubr.bf16.mxu0 0
    %1330 = vmatmul.mubr.bf16.gmra.mrb[0].mxu0 %v1295
    %v1331 = vpop.f32.mrb[0].mxu0
    %v1332 = vadd.f32 0.0, %v1331
    %v1333 = vpop.f32.mrb[0].mxu0
    %v1334 = vpop.f32.mrb[0].mxu0
    %v1335 = vadd.f32 0.0, %v1334
    %v1336 = vpop.f32.mrb[0].mxu0
    %1337 = vdwg.mxu0
    %v1338 = vpack.c.bf16 %v1288, %v1285
    %v1339 = vpack.c.bf16 %v1335, %v1332
    %s1340 = scalar_lea.vmem [#allocation8], 32
    %v1341 = vld [vmem:[%s1340] sm:$0xf]
    %v1342 = vld [vmem:[%s1340 + $0x4] sm:$0xf]
    %v1343 = vld [vmem:[%s1340 + $0x8] sm:$0xf]
    %v1344 = vld [vmem:[%s1340 + $0xc] sm:$0xf]
    %v1349 = vunpack.c.l.b16 %v1341
    %v1350 = vunpack.c.l.b16 %v1342
    %v1351 = vunpack.c.l.b16 %v1343
    %v1352 = vunpack.c.l.b16 %v1344
    %v1353 = vpack.c.b16 %v1350, %v1349
    %v1354 = vpack.c.b16 %v1352, %v1351
    %v1358 = vsel %vm433, %v1338, 0
    %v1361 = vsel %vm433, %v1339, 0
    %1363 = vmatprep.subr.bf16.mxu0 0
    %1364 = vmatpush1.bf16.msra.mxu0 %v1353
    %1365 = vmatprep.subr.bf16.mxu0 0
    %1366 = vmatpush1.bf16.msra.mxu0 %v1354
    %1367 = vmatprep.subr.bf16.mxu0 0
    %1368 = vmatpush1.bf16.msra.mxu0 0
    %1369 = vmatprep.subr.bf16.mxu0 0
    %1370 = vmatpush1.bf16.msra.mxu0 0
    %1371 = vmatprep.subr.bf16.mxu0 0
    %1372 = vmatpush1.bf16.msra.mxu0 0
    %1373 = vmatprep.subr.bf16.mxu0 0
    %1374 = vmatpush1.bf16.msra.mxu0 0
    %1375 = vmatprep.subr.bf16.mxu0 0
    %1376 = vmatpush1.bf16.msra.mxu0 0
    %1377 = vmatprep.subr.bf16.mxu0 0
    %1378 = vmatpush1.bf16.msra.mxu0 0
    %1379 = vmatprep.subr.bf16.mxu0 0
    %1380 = vmatpush1.bf16.msra.mxu0 0
    %1381 = vmatprep.subr.bf16.mxu0 0
    %1382 = vmatpush1.bf16.msra.mxu0 0
    %1383 = vmatprep.subr.bf16.mxu0 0
    %1384 = vmatpush1.bf16.msra.mxu0 0
    %1385 = vmatprep.subr.bf16.mxu0 0
    %1386 = vmatpush1.bf16.msra.mxu0 0
    %1387 = vmatprep.subr.bf16.mxu0 0
    %1388 = vmatpush1.bf16.msra.mxu0 0
    %1389 = vmatprep.subr.bf16.mxu0 0
    %1390 = vmatpush1.bf16.msra.mxu0 0
    %1391 = vmatprep.subr.bf16.mxu0 0
    %1392 = vmatpush1.bf16.msra.mxu0 0
    %1393 = vmatprep.subr.bf16.mxu0 0
    %1394 = vmatpush1.bf16.msra.mxu0 0
    %1395 = vmatprep.mubr.bf16.mxu0 0
    %1396 = vmatmul.mubr.bf16.gmra.mrb[0].mxu0 %v1358
    %v1397 = vpop.f32.mrb[0].mxu0
    %v1398 = vadd.f32 0.0, %v1397
    %v1399 = vpop.f32.mrb[0].mxu0
    %v1400 = vpop.f32.mrb[0].mxu0
    %v1401 = vadd.f32 0.0, %v1400
    %v1402 = vpop.f32.mrb[0].mxu0
    %1403 = vmatprep.mubr.bf16.mxu0 0
    %1404 = vmatmul.mubr.bf16.gmra.mrb[0].mxu0 %v1361
    %v1405 = vpop.f32.mrb[0].mxu0
    %v1406 = vadd.f32 0.0, %v1405
    %v1407 = vpop.f32.mrb[0].mxu0
    %v1408 = vpop.f32.mrb[0].mxu0
    %v1409 = vadd.f32 0.0, %v1408
    %v1410 = vpop.f32.mrb[0].mxu0
    %1411 = vdwg.mxu0
    %v1412 = vadd.f32 %v1069, %v1398
    %v1413 = vadd.f32 %v1072, %v1401
    %v1414 = vadd.f32 %v1077, %v1406
    %v1415 = vadd.f32 %v1080, %v1409
    %1416 = vrot.lane.b32.xlu0 %v419, 32
    %v1417 = vpop.permute.xlu0 %1416
    %1418 = vrot.lane.b32.xlu0 %v421, 32
    %v1419 = vpop.permute.xlu0 %1418
    %v1421 = vsel %vm433, %v1417, 0
    %v1424 = vsel %vm433, %v1419, 0
    %1426 = vmatprep.subr.bf16.mxu0 0
    %1427 = vmatpush1.bf16.xpose.msra.mxu0 %v1424
    %1428 = vmatprep.subr.bf16.mxu0 0
    %1429 = vmatpush1.bf16.xpose.msra.mxu0 0
    %1430 = vmatprep.subr.bf16.mxu0 0
    %1431 = vmatpush1.bf16.xpose.msra.mxu0 0
    %1432 = vmatprep.subr.bf16.mxu0 0
    %1433 = vmatpush1.bf16.xpose.msra.mxu0 0
    %1434 = vmatprep.subr.bf16.mxu0 0
    %1435 = vmatpush1.bf16.xpose.msra.mxu0 0
    %1436 = vmatprep.subr.bf16.mxu0 0
    %1437 = vmatpush1.bf16.xpose.msra.mxu0 0
    %1438 = vmatprep.subr.bf16.mxu0 0
    %1439 = vmatpush1.bf16.xpose.msra.mxu0 0
    %1440 = vmatprep.subr.bf16.mxu0 0
    %1441 = vmatpush1.bf16.xpose.msra.mxu0 0
    %1442 = vmatprep.subr.bf16.mxu0 0
    %1443 = vmatpush1.bf16.xpose.msra.mxu0 0
    %1444 = vmatprep.subr.bf16.mxu0 0
    %1445 = vmatpush1.bf16.xpose.msra.mxu0 0
    %1446 = vmatprep.subr.bf16.mxu0 0
    %1447 = vmatpush1.bf16.xpose.msra.mxu0 0
    %1448 = vmatprep.subr.bf16.mxu0 0
    %1449 = vmatpush1.bf16.xpose.msra.mxu0 0
    %1450 = vmatprep.subr.bf16.mxu0 0
    %1451 = vmatpush1.bf16.xpose.msra.mxu0 0
    %1452 = vmatprep.subr.bf16.mxu0 0
    %1453 = vmatpush1.bf16.xpose.msra.mxu0 0
    %1454 = vmatprep.subr.bf16.mxu0 0
    %1455 = vmatpush1.bf16.xpose.msra.mxu0 0
    %1456 = vmatprep.subr.bf16.mxu0 0
    %1457 = vmatpush1.bf16.xpose.msra.mxu0 0
    %1458 = vmatprep.mubr.bf16.mxu0 0
    %1459 = vmatmul.mubr.bf16.gmra.mrb[0].mxu0 %v1421
    %v1460 = vpop.f32.mrb[0].mxu0
    %v1461 = vadd.f32 0.0, %v1460
    %v1462 = vpop.f32.mrb[0].mxu0
    %v1463 = vpop.f32.mrb[0].mxu0
    %v1464 = vadd.f32 0.0, %v1463
    %v1465 = vpop.f32.mrb[0].mxu0
    %1466 = vdwg.mxu0
    %1467 = vrot.lane.b32.xlu0 %v420, 32
    %v1468 = vpop.permute.xlu0 %1467
    %1469 = vrot.lane.b32.xlu0 %v422, 32
    %v1470 = vpop.permute.xlu0 %1469
    %v1472 = vsel %vm433, %v1468, 0
    %v1475 = vsel %vm433, %v1470, 0
    %1477 = vmatprep.subr.bf16.mxu0 0
    %1478 = vmatpush1.bf16.xpose.msra.mxu0 %v1475
    %1479 = vmatprep.subr.bf16.mxu0 0
    %1480 = vmatpush1.bf16.xpose.msra.mxu0 0
    %1481 = vmatprep.subr.bf16.mxu0 0
    %1482 = vmatpush1.bf16.xpose.msra.mxu0 0
    %1483 = vmatprep.subr.bf16.mxu0 0
    %1484 = vmatpush1.bf16.xpose.msra.mxu0 0
    %1485 = vmatprep.subr.bf16.mxu0 0
    %1486 = vmatpush1.bf16.xpose.msra.mxu0 0
    %1487 = vmatprep.subr.bf16.mxu0 0
    %1488 = vmatpush1.bf16.xpose.msra.mxu0 0
    %1489 = vmatprep.subr.bf16.mxu0 0
    %1490 = vmatpush1.bf16.xpose.msra.mxu0 0
    %1491 = vmatprep.subr.bf16.mxu0 0
    %1492 = vmatpush1.bf16.xpose.msra.mxu0 0
    %1493 = vmatprep.subr.bf16.mxu0 0
    %1494 = vmatpush1.bf16.xpose.msra.mxu0 0
    %1495 = vmatprep.subr.bf16.mxu0 0
    %1496 = vmatpush1.bf16.xpose.msra.mxu0 0
    %1497 = vmatprep.subr.bf16.mxu0 0
    %1498 = vmatpush1.bf16.xpose.msra.mxu0 0
    %1499 = vmatprep.subr.bf16.mxu0 0
    %1500 = vmatpush1.bf16.xpose.msra.mxu0 0
    %1501 = vmatprep.subr.bf16.mxu0 0
    %1502 = vmatpush1.bf16.xpose.msra.mxu0 0
    %1503 = vmatprep.subr.bf16.mxu0 0
    %1504 = vmatpush1.bf16.xpose.msra.mxu0 0
    %1505 = vmatprep.subr.bf16.mxu0 0
    %1506 = vmatpush1.bf16.xpose.msra.mxu0 0
    %1507 = vmatprep.subr.bf16.mxu0 0
    %1508 = vmatpush1.bf16.xpose.msra.mxu0 0
    %1509 = vmatprep.mubr.bf16.mxu0 0
    %1510 = vmatmul.mubr.bf16.gmra.mrb[0].mxu0 %v1472
    %v1511 = vpop.f32.mrb[0].mxu0
    %v1512 = vadd.f32 0.0, %v1511
    %v1513 = vpop.f32.mrb[0].mxu0
    %v1514 = vpop.f32.mrb[0].mxu0
    %v1515 = vadd.f32 0.0, %v1514
    %v1516 = vpop.f32.mrb[0].mxu0
    %1517 = vdwg.mxu0
    %v1518 = vmul.f32 %v1461, 0.17677669
    %v1519 = vmul.f32 %v1464, 0.17677669
    %v1520 = vmul.f32 %v1512, 0.17677669
    %v1521 = vmul.f32 %v1515, 0.17677669
    %v1522 = vsel %vm429, -1e+09, %v1518
    %v1523 = vsel %vm430, -1e+09, %v1519
    %v1524 = vsel %vm431, -1e+09, %v1520
    %v1525 = vsel %vm432, -1e+09, %v1521
    %v1526 = vsel %vm536, %v1522, -inf
    %1527 = vmax.xlane.f32.xlu0 %v1526
    %v1528 = vpop.xlane.xlu0 %1527
    %v1529 = vsel %vm536, %v1523, -inf
    %1530 = vmax.xlane.f32.xlu0 %v1529
    %v1531 = vpop.xlane.xlu0 %1530
    %v1532 = vsel %vm536, %v1524, -inf
    %1533 = vmax.xlane.f32.xlu0 %v1532
    %v1534 = vpop.xlane.xlu0 %1533
    %v1535 = vsel %vm536, %v1525, -inf
    %1536 = vmax.xlane.f32.xlu0 %v1535
    %v1537 = vpop.xlane.xlu0 %1536
    %v1538 = vsub.f32 %v1522, %v1528
    %v1539 = vsub.f32 %v1523, %v1531
    %v1540 = vsub.f32 %v1524, %v1534
    %v1541 = vsub.f32 %v1525, %v1537
    %v1542 = vmul.f32 %v1538, 1.442695
    %v1543 = vpow.pop %v1542
    %v1544 = vmul.f32 %v1539, 1.442695
    %v1545 = vpow.pop %v1544
    %v1546 = vmul.f32 %v1540, 1.442695
    %v1547 = vpow.pop %v1546
    %v1548 = vmul.f32 %v1541, 1.442695
    %v1549 = vpow.pop %v1548
    %v1550 = vsel %vm536, %v1543, 0.0
    %1551 = vadd.xlane.f32.xlu0 %v1550
    %v1552 = vpop.xlane.xlu0 %1551
    %v1553 = vsel %vm536, %v1545, 0.0
    %1554 = vadd.xlane.f32.xlu0 %v1553
    %v1555 = vpop.xlane.xlu0 %1554
    %v1556 = vsel %vm536, %v1547, 0.0
    %1557 = vadd.xlane.f32.xlu0 %v1556
    %v1558 = vpop.xlane.xlu0 %1557
    %v1559 = vsel %vm536, %v1549, 0.0
    %1560 = vadd.xlane.f32.xlu0 %v1559
    %v1561 = vpop.xlane.xlu0 %1560
    %v1562 = vrcp.pop %v1552
    %v1563 = vrcp.pop %v1555
    %v1564 = vrcp.pop %v1558
    %v1565 = vrcp.pop %v1561
    %v1566 = vmul.f32 %v1543, %v1562
    %v1567 = vmul.f32 %v1545, %v1563
    %v1568 = vmul.f32 %v1547, %v1564
    %v1569 = vmul.f32 %v1549, %v1565
    %s1570 = scalar_lea.vmem [#allocation14], 48
    %1571 = vst.msk [vmem:[%s1570] sm:$0xff] %vm536, %v1566
    %1572 = vst.msk [vmem:[%s1570 + $0x8] sm:$0xff] %vm536, %v1567
    %1573 = vst.msk [vmem:[%s1570 + $0x40] sm:$0xff] %vm536, %v1568
    %1574 = vst.msk [vmem:[%s1570 + $0x48] sm:$0xff] %vm536, %v1569
    %v1575 = vpack.c.bf16 %v1567, %v1566
    %v1576 = vpack.c.bf16 %v1569, %v1568
    %1577 = vrot.lane.b32.xlu0 %v423, 32
    %v1578 = vpop.permute.xlu0 %1577
    %v1581 = vsel %vm536, %v1575, 0
    %1583 = vmatprep.subr.bf16.mxu0 0
    %1584 = vmatpush1.bf16.msra.mxu0 %v1578
    %1585 = vmatprep.subr.bf16.mxu0 0
    %1586 = vmatpush1.bf16.msra.mxu0 0
    %1587 = vmatprep.subr.bf16.mxu0 0
    %1588 = vmatpush1.bf16.msra.mxu0 0
    %1589 = vmatprep.subr.bf16.mxu0 0
    %1590 = vmatpush1.bf16.msra.mxu0 0
    %1591 = vmatprep.subr.bf16.mxu0 0
    %1592 = vmatpush1.bf16.msra.mxu0 0
    %1593 = vmatprep.subr.bf16.mxu0 0
    %1594 = vmatpush1.bf16.msra.mxu0 0
    %1595 = vmatprep.subr.bf16.mxu0 0
    %1596 = vmatpush1.bf16.msra.mxu0 0
    %1597 = vmatprep.subr.bf16.mxu0 0
    %1598 = vmatpush1.bf16.msra.mxu0 0
    %1599 = vmatprep.subr.bf16.mxu0 0
    %1600 = vmatpush1.bf16.msra.mxu0 0
    %1601 = vmatprep.subr.bf16.mxu0 0
    %1602 = vmatpush1.bf16.msra.mxu0 0
    %1603 = vmatprep.subr.bf16.mxu0 0
    %1604 = vmatpush1.bf16.msra.mxu0 0
    %1605 = vmatprep.subr.bf16.mxu0 0
    %1606 = vmatpush1.bf16.msra.mxu0 0
    %1607 = vmatprep.subr.bf16.mxu0 0
    %1608 = vmatpush1.bf16.msra.mxu0 0
    %1609 = vmatprep.subr.bf16.mxu0 0
    %1610 = vmatpush1.bf16.msra.mxu0 0
    %1611 = vmatprep.subr.bf16.mxu0 0
    %1612 = vmatpush1.bf16.msra.mxu0 0
    %1613 = vmatprep.subr.bf16.mxu0 0
    %1614 = vmatpush1.bf16.msra.mxu0 0
    %1615 = vmatprep.mubr.bf16.mxu0 0
    %1616 = vmatmul.mubr.bf16.gmra.mrb[0].mxu0 %v1581
    %v1617 = vpop.f32.mrb[0].mxu0
    %v1618 = vadd.f32 0.0, %v1617
    %v1619 = vpop.f32.mrb[0].mxu0
    %v1620 = vpop.f32.mrb[0].mxu0
    %v1621 = vadd.f32 0.0, %v1620
    %v1622 = vpop.f32.mrb[0].mxu0
    %1623 = vdwg.mxu0
    %1624 = vrot.lane.b32.xlu0 %v424, 32
    %v1625 = vpop.permute.xlu0 %1624
    %v1628 = vsel %vm536, %v1576, 0
    %1630 = vmatprep.subr.bf16.mxu0 0
    %1631 = vmatpush1.bf16.msra.mxu0 %v1625
    %1632 = vmatprep.subr.bf16.mxu0 0
    %1633 = vmatpush1.bf16.msra.mxu0 0
    %1634 = vmatprep.subr.bf16.mxu0 0
    %1635 = vmatpush1.bf16.msra.mxu0 0
    %1636 = vmatprep.subr.bf16.mxu0 0
    %1637 = vmatpush1.bf16.msra.mxu0 0
    %1638 = vmatprep.subr.bf16.mxu0 0
    %1639 = vmatpush1.bf16.msra.mxu0 0
    %1640 = vmatprep.subr.bf16.mxu0 0
    %1641 = vmatpush1.bf16.msra.mxu0 0
    %1642 = vmatprep.subr.bf16.mxu0 0
    %1643 = vmatpush1.bf16.msra.mxu0 0
    %1644 = vmatprep.subr.bf16.mxu0 0
    %1645 = vmatpush1.bf16.msra.mxu0 0
    %1646 = vmatprep.subr.bf16.mxu0 0
    %1647 = vmatpush1.bf16.msra.mxu0 0
    %1648 = vmatprep.subr.bf16.mxu0 0
    %1649 = vmatpush1.bf16.msra.mxu0 0
    %1650 = vmatprep.subr.bf16.mxu0 0
    %1651 = vmatpush1.bf16.msra.mxu0 0
    %1652 = vmatprep.subr.bf16.mxu0 0
    %1653 = vmatpush1.bf16.msra.mxu0 0
    %1654 = vmatprep.subr.bf16.mxu0 0
    %1655 = vmatpush1.bf16.msra.mxu0 0
    %1656 = vmatprep.subr.bf16.mxu0 0
    %1657 = vmatpush1.bf16.msra.mxu0 0
    %1658 = vmatprep.subr.bf16.mxu0 0
    %1659 = vmatpush1.bf16.msra.mxu0 0
    %1660 = vmatprep.subr.bf16.mxu0 0
    %1661 = vmatpush1.bf16.msra.mxu0 0
    %1662 = vmatprep.mubr.bf16.mxu0 0
    %1663 = vmatmul.mubr.bf16.gmra.mrb[0].mxu0 %v1628
    %v1664 = vpop.f32.mrb[0].mxu0
    %v1665 = vadd.f32 0.0, %v1664
    %v1666 = vpop.f32.mrb[0].mxu0
    %v1667 = vpop.f32.mrb[0].mxu0
    %v1668 = vadd.f32 0.0, %v1667
    %v1669 = vpop.f32.mrb[0].mxu0
    %1670 = vdwg.mxu0
    %v1671 = vpack.c.bf16 %v1621, %v1618
    %v1672 = vpack.c.bf16 %v1668, %v1665
    %s1673 = scalar_lea.vmem [#allocation8], 48
    %v1674 = vld [vmem:[%s1673] sm:$0xf]
    %v1675 = vld [vmem:[%s1673 + $0x4] sm:$0xf]
    %v1676 = vld [vmem:[%s1673 + $0x8] sm:$0xf]
    %v1677 = vld [vmem:[%s1673 + $0xc] sm:$0xf]
    %v1682 = vunpack.c.l.b16 %v1674
    %v1683 = vunpack.c.l.b16 %v1675
    %v1684 = vunpack.c.l.b16 %v1676
    %v1685 = vunpack.c.l.b16 %v1677
    %v1686 = vpack.c.b16 %v1683, %v1682
    %v1687 = vpack.c.b16 %v1685, %v1684
    %v1691 = vsel %vm433, %v1671, 0
    %v1694 = vsel %vm433, %v1672, 0
    %1696 = vmatprep.subr.bf16.mxu0 0
    %1697 = vmatpush1.bf16.msra.mxu0 %v1686
    %1698 = vmatprep.subr.bf16.mxu0 0
    %1699 = vmatpush1.bf16.msra.mxu0 %v1687
    %1700 = vmatprep.subr.bf16.mxu0 0
    %1701 = vmatpush1.bf16.msra.mxu0 0
    %1702 = vmatprep.subr.bf16.mxu0 0
    %1703 = vmatpush1.bf16.msra.mxu0 0
    %1704 = vmatprep.subr.bf16.mxu0 0
    %1705 = vmatpush1.bf16.msra.mxu0 0
    %1706 = vmatprep.subr.bf16.mxu0 0
    %1707 = vmatpush1.bf16.msra.mxu0 0
    %1708 = vmatprep.subr.bf16.mxu0 0
    %1709 = vmatpush1.bf16.msra.mxu0 0
    %1710 = vmatprep.subr.bf16.mxu0 0
    %1711 = vmatpush1.bf16.msra.mxu0 0
    %1712 = vmatprep.subr.bf16.mxu0 0
    %1713 = vmatpush1.bf16.msra.mxu0 0
    %1714 = vmatprep.subr.bf16.mxu0 0
    %1715 = vmatpush1.bf16.msra.mxu0 0
    %1716 = vmatprep.subr.bf16.mxu0 0
    %1717 = vmatpush1.bf16.msra.mxu0 0
    %1718 = vmatprep.subr.bf16.mxu0 0
    %1719 = vmatpush1.bf16.msra.mxu0 0
    %1720 = vmatprep.subr.bf16.mxu0 0
    %1721 = vmatpush1.bf16.msra.mxu0 0
    %1722 = vmatprep.subr.bf16.mxu0 0
    %1723 = vmatpush1.bf16.msra.mxu0 0
    %1724 = vmatprep.subr.bf16.mxu0 0
    %1725 = vmatpush1.bf16.msra.mxu0 0
    %1726 = vmatprep.subr.bf16.mxu0 0
    %1727 = vmatpush1.bf16.msra.mxu0 0
    %1728 = vmatprep.mubr.bf16.mxu0 0
    %1729 = vmatmul.mubr.bf16.gmra.mrb[0].mxu0 %v1691
    %v1730 = vpop.f32.mrb[0].mxu0
    %v1731 = vadd.f32 0.0, %v1730
    %v1732 = vpop.f32.mrb[0].mxu0
    %v1733 = vpop.f32.mrb[0].mxu0
    %v1734 = vadd.f32 0.0, %v1733
    %v1735 = vpop.f32.mrb[0].mxu0
    %1736 = vmatprep.mubr.bf16.mxu0 0
    %1737 = vmatmul.mubr.bf16.gmra.mrb[0].mxu0 %v1694
    %v1738 = vpop.f32.mrb[0].mxu0
    %v1739 = vadd.f32 0.0, %v1738
    %v1740 = vpop.f32.mrb[0].mxu0
    %v1741 = vpop.f32.mrb[0].mxu0
    %v1742 = vadd.f32 0.0, %v1741
    %v1743 = vpop.f32.mrb[0].mxu0
    %1744 = vdwg.mxu0
    %v1745 = vadd.f32 %v1412, %v1731
    %v1746 = vadd.f32 %v1413, %v1734
    %v1747 = vadd.f32 %v1414, %v1739
    %v1748 = vadd.f32 %v1415, %v1742
    %v1749 = vld [vmem:[%s5] sm:$0x1]
    %v1751 = vlaneseq
    %v1752 = vshrl.u32 %v1751, 7
    %v1753 = vsub.s32 0, %v1752
    %v1754 = vrot.slane %v1749, %v1753
    %v1756 = vadd.f32 %v1745, %v1754
    %v1757 = vadd.f32 %v1746, %v1754
    %v1758 = vadd.f32 %v1747, %v1754
    %v1759 = vadd.f32 %v1748, %v1754
    %v1760 = vadd.f32 %v1756, %v134
    %v1761 = vadd.f32 %v1757, %v135
    %v1762 = vadd.f32 %v1758, %v136
    %v1763 = vadd.f32 %v1759, %v137
    %v1764 = vld [vmem:[%s6] sm:$0x1]
    %v1765 = vld [vmem:[%s7] sm:$0x1]
    %1766 = vadd.xlane.f32.xlu0 %v1760
    %v1767 = vpop.xlane.xlu0 %1766
    %1768 = vadd.xlane.f32.xlu0 %v1761
    %v1769 = vpop.xlane.xlu0 %1768
    %1770 = vadd.xlane.f32.xlu0 %v1762
    %v1771 = vpop.xlane.xlu0 %1770
    %1772 = vadd.xlane.f32.xlu0 %v1763
    %v1773 = vpop.xlane.xlu0 %1772
    %v1774 = vrcp.pop 128.0
    %v1775 = vmul.f32 %v1767, %v1774
    %v1776 = vmul.f32 %v1769, %v1774
    %v1777 = vmul.f32 %v1771, %v1774
    %v1778 = vmul.f32 %v1773, %v1774
    %v1779 = vsub.f32 %v1760, %v1775
    %v1780 = vsub.f32 %v1761, %v1776
    %v1781 = vsub.f32 %v1762, %v1777
    %v1782 = vsub.f32 %v1763, %v1778
    %v1783 = vmul.f32 %v1779, %v1779
    %v1784 = vmul.f32 %v1780, %v1780
    %v1785 = vmul.f32 %v1781, %v1781
    %v1786 = vmul.f32 %v1782, %v1782
    %1787 = vadd.xlane.f32.xlu0 %v1783
    %v1788 = vpop.xlane.xlu0 %1787
    %1789 = vadd.xlane.f32.xlu0 %v1784
    %v1790 = vpop.xlane.xlu0 %1789
    %1791 = vadd.xlane.f32.xlu0 %v1785
    %v1792 = vpop.xlane.xlu0 %1791
    %1793 = vadd.xlane.f32.xlu0 %v1786
    %v1794 = vpop.xlane.xlu0 %1793
    %v1795 = vmul.f32 %v1788, %v1774
    %v1796 = vmul.f32 %v1790, %v1774
    %v1797 = vmul.f32 %v1792, %v1774
    %v1798 = vmul.f32 %v1794, %v1774
    %v1799 = vadd.f32 %v1795, 1e-05
    %v1800 = vadd.f32 %v1796, 1e-05
    %v1801 = vadd.f32 %v1797, 1e-05
    %v1802 = vadd.f32 %v1798, 1e-05
    %v1803 = vrsqrt.pop %v1799
    %v1804 = vrsqrt.pop %v1800
    %v1805 = vrsqrt.pop %v1801
    %v1806 = vrsqrt.pop %v1802
    %v1807 = vmul.f32 %v1779, %v1803
    %v1808 = vmul.f32 %v1780, %v1804
    %v1809 = vmul.f32 %v1781, %v1805
    %v1810 = vmul.f32 %v1782, %v1806
    %v1812 = vlaneseq
    %v1813 = vshrl.u32 %v1812, 7
    %v1814 = vsub.s32 0, %v1813
    %v1815 = vrot.slane %v1764, %v1814
    %v1817 = vmul.f32 %v1807, %v1815
    %v1818 = vmul.f32 %v1808, %v1815
    %v1819 = vmul.f32 %v1809, %v1815
    %v1820 = vmul.f32 %v1810, %v1815
    %v1822 = vlaneseq
    %v1823 = vshrl.u32 %v1822, 7
    %v1824 = vsub.s32 0, %v1823
    %v1825 = vrot.slane %v1765, %v1824
    %v1827 = vadd.f32 %v1817, %v1825
    %v1828 = vadd.f32 %v1818, %v1825
    %v1829 = vadd.f32 %v1819, %v1825
    %v1830 = vadd.f32 %v1820, %v1825
    %v1831 = vpack.c.bf16 %v1828, %v1827
    %v1832 = vpack.c.bf16 %v1830, %v1829
    %v1833 = vld [vmem:[#allocation10] sm:$0xff]
    %v1834 = vld [vmem:[#allocation10 + $0x8] sm:$0xff]
    %v1835 = vld [vmem:[#allocation10 + $0x10] sm:$0xff]
    %v1836 = vld [vmem:[#allocation10 + $0x18] sm:$0xff]
    %v1837 = vld [vmem:[#allocation10 + $0x20] sm:$0xff]
    %v1838 = vld [vmem:[#allocation10 + $0x28] sm:$0xff]
    %v1839 = vld [vmem:[#allocation10 + $0x30] sm:$0xff]
    %v1840 = vld [vmem:[#allocation10 + $0x38] sm:$0xff]
    %v1841 = vld [vmem:[#allocation10 + $0x40] sm:$0xff]
    %v1842 = vld [vmem:[#allocation10 + $0x48] sm:$0xff]
    %v1843 = vld [vmem:[#allocation10 + $0x50] sm:$0xff]
    %v1844 = vld [vmem:[#allocation10 + $0x58] sm:$0xff]
    %v1845 = vld [vmem:[#allocation10 + $0x60] sm:$0xff]
    %v1846 = vld [vmem:[#allocation10 + $0x68] sm:$0xff]
    %v1847 = vld [vmem:[#allocation10 + $0x70] sm:$0xff]
    %v1848 = vld [vmem:[#allocation10 + $0x78] sm:$0xff]
    %v1849 = vld [vmem:[%s9] sm:$0x3]
    %v1851 = vlaneseq
    %v1852 = vshrl.u32 %v1851, 7
    %v1853 = vsub.s32 0, %v1852
    %v1854 = vrot.slane %v1849, %v1853
    %v1855 = vlaneseq
    %v1856 = vshrl.u32 %v1855, 7
    %v1857 = vsub.s32 1, %v1856
    %v1858 = vrot.slane %v1849, %v1857
    %v1877 = vunpack.c.l.b16 %v1833
    %v1878 = vunpack.c.h.b16 %v1833
    %v1879 = vunpack.c.l.b16 %v1834
    %v1880 = vunpack.c.h.b16 %v1834
    %v1881 = vunpack.c.l.b16 %v1835
    %v1882 = vunpack.c.h.b16 %v1835
    %v1883 = vunpack.c.l.b16 %v1836
    %v1884 = vunpack.c.h.b16 %v1836
    %v1885 = vunpack.c.l.b16 %v1837
    %v1886 = vunpack.c.h.b16 %v1837
    %v1887 = vunpack.c.l.b16 %v1838
    %v1888 = vunpack.c.h.b16 %v1838
    %v1889 = vunpack.c.l.b16 %v1839
    %v1890 = vunpack.c.h.b16 %v1839
    %v1891 = vunpack.c.l.b16 %v1840
    %v1892 = vunpack.c.h.b16 %v1840
    %v1893 = vunpack.c.l.b16 %v1841
    %v1894 = vunpack.c.h.b16 %v1841
    %v1895 = vunpack.c.l.b16 %v1842
    %v1896 = vunpack.c.h.b16 %v1842
    %v1897 = vunpack.c.l.b16 %v1843
    %v1898 = vunpack.c.h.b16 %v1843
    %v1899 = vunpack.c.l.b16 %v1844
    %v1900 = vunpack.c.h.b16 %v1844
    %v1901 = vunpack.c.l.b16 %v1845
    %v1902 = vunpack.c.h.b16 %v1845
    %v1903 = vunpack.c.l.b16 %v1846
    %v1904 = vunpack.c.h.b16 %v1846
    %v1905 = vunpack.c.l.b16 %v1847
    %v1906 = vunpack.c.h.b16 %v1847
    %v1907 = vunpack.c.l.b16 %v1848
    %v1908 = vunpack.c.h.b16 %v1848
    %v1909 = vpack.c.b16 %v1879, %v1877
    %v1910 = vpack.c.b16 %v1880, %v1878
    %v1911 = vpack.c.b16 %v1883, %v1881
    %v1912 = vpack.c.b16 %v1884, %v1882
    %v1913 = vpack.c.b16 %v1887, %v1885
    %v1914 = vpack.c.b16 %v1888, %v1886
    %v1915 = vpack.c.b16 %v1891, %v1889
    %v1916 = vpack.c.b16 %v1892, %v1890
    %v1917 = vpack.c.b16 %v1895, %v1893
    %v1918 = vpack.c.b16 %v1896, %v1894
    %v1919 = vpack.c.b16 %v1899, %v1897
    %v1920 = vpack.c.b16 %v1900, %v1898
    %v1921 = vpack.c.b16 %v1903, %v1901
    %v1922 = vpack.c.b16 %v1904, %v1902
    %v1923 = vpack.c.b16 %v1907, %v1905
    %v1924 = vpack.c.b16 %v1908, %v1906
    %1941 = vmatprep.subr.bf16.mxu0 %v1910
    %1942 = vmatpush1.bf16.msra.mxu0 %v1909
    %1943 = vmatprep.subr.bf16.mxu0 %v1912
    %1944 = vmatpush1.bf16.msra.mxu0 %v1911
    %1945 = vmatprep.subr.bf16.mxu0 %v1914
    %1946 = vmatpush1.bf16.msra.mxu0 %v1913
    %1947 = vmatprep.subr.bf16.mxu0 %v1916
    %1948 = vmatpush1.bf16.msra.mxu0 %v1915
    %1949 = vmatprep.subr.bf16.mxu0 %v1918
    %1950 = vmatpush1.bf16.msra.mxu0 %v1917
    %1951 = vmatprep.subr.bf16.mxu0 %v1920
    %1952 = vmatpush1.bf16.msra.mxu0 %v1919
    %1953 = vmatprep.subr.bf16.mxu0 %v1922
    %1954 = vmatpush1.bf16.msra.mxu0 %v1921
    %1955 = vmatprep.subr.bf16.mxu0 %v1924
    %1956 = vmatpush1.bf16.msra.mxu0 %v1923
    %1957 = vmatprep.subr.bf16.mxu0 0
    %1958 = vmatpush1.bf16.msra.mxu0 0
    %1959 = vmatprep.subr.bf16.mxu0 0
    %1960 = vmatpush1.bf16.msra.mxu0 0
    %1961 = vmatprep.subr.bf16.mxu0 0
    %1962 = vmatpush1.bf16.msra.mxu0 0
    %1963 = vmatprep.subr.bf16.mxu0 0
    %1964 = vmatpush1.bf16.msra.mxu0 0
    %1965 = vmatprep.subr.bf16.mxu0 0
    %1966 = vmatpush1.bf16.msra.mxu0 0
    %1967 = vmatprep.subr.bf16.mxu0 0
    %1968 = vmatpush1.bf16.msra.mxu0 0
    %1969 = vmatprep.subr.bf16.mxu0 0
    %1970 = vmatpush1.bf16.msra.mxu0 0
    %1971 = vmatprep.subr.bf16.mxu0 0
    %1972 = vmatpush1.bf16.msra.mxu0 0
    %1973 = vmatprep.mubr.bf16.mxu0 0
    %1974 = vmatmul.mubr.bf16.gmra.mrb[0].mxu0 %v1831
    %v1975 = vpop.f32.mrb[0].mxu0
    %v1976 = vadd.f32 %v1854, %v1975
    %v1977 = vpop.f32.mrb[0].mxu0
    %v1978 = vadd.f32 %v1858, %v1977
    %v1979 = vpop.f32.mrb[0].mxu0
    %v1980 = vadd.f32 %v1854, %v1979
    %v1981 = vpop.f32.mrb[0].mxu0
    %v1982 = vadd.f32 %v1858, %v1981
    %1983 = vmatprep.mubr.bf16.mxu0 0
    %1984 = vmatmul.mubr.bf16.gmra.mrb[0].mxu0 %v1832
    %v1985 = vpop.f32.mrb[0].mxu0
    %v1986 = vadd.f32 %v1854, %v1985
    %v1987 = vpop.f32.mrb[0].mxu0
    %v1988 = vadd.f32 %v1858, %v1987
    %v1989 = vpop.f32.mrb[0].mxu0
    %v1990 = vadd.f32 %v1854, %v1989
    %v1991 = vpop.f32.mrb[0].mxu0
    %v1992 = vadd.f32 %v1858, %v1991
    %1993 = vdwg.mxu0
    %v1994 = vmax.f32 %v1976, 0.0
    %v1995 = vmax.f32 %v1978, 0.0
    %v1996 = vmax.f32 %v1980, 0.0
    %v1997 = vmax.f32 %v1982, 0.0
    %v1998 = vmax.f32 %v1986, 0.0
    %v1999 = vmax.f32 %v1988, 0.0
    %v2000 = vmax.f32 %v1990, 0.0
    %v2001 = vmax.f32 %v1992, 0.0
    %v2002 = vpack.c.bf16 %v1996, %v1994
    %v2003 = vpack.c.bf16 %v1997, %v1995
    %v2004 = vpack.c.bf16 %v2000, %v1998
    %v2005 = vpack.c.bf16 %v2001, %v1999
    %v2006 = vld [vmem:[#allocation11] sm:$0xf]
    %v2007 = vld [vmem:[#allocation11 + $0x4] sm:$0xf]
    %v2008 = vld [vmem:[#allocation11 + $0x8] sm:$0xf]
    %v2009 = vld [vmem:[#allocation11 + $0xc] sm:$0xf]
    %v2010 = vld [vmem:[#allocation11 + $0x10] sm:$0xf]
    %v2011 = vld [vmem:[#allocation11 + $0x14] sm:$0xf]
    %v2012 = vld [vmem:[#allocation11 + $0x18] sm:$0xf]
    %v2013 = vld [vmem:[#allocation11 + $0x1c] sm:$0xf]
    %v2014 = vld [vmem:[#allocation11 + $0x20] sm:$0xf]
    %v2015 = vld [vmem:[#allocation11 + $0x24] sm:$0xf]
    %v2016 = vld [vmem:[#allocation11 + $0x28] sm:$0xf]
    %v2017 = vld [vmem:[#allocation11 + $0x2c] sm:$0xf]
    %v2018 = vld [vmem:[#allocation11 + $0x30] sm:$0xf]
    %v2019 = vld [vmem:[#allocation11 + $0x34] sm:$0xf]
    %v2020 = vld [vmem:[#allocation11 + $0x38] sm:$0xf]
    %v2021 = vld [vmem:[#allocation11 + $0x3c] sm:$0xf]
    %v2022 = vld [vmem:[#allocation11 + $0x40] sm:$0xf]
    %v2023 = vld [vmem:[#allocation11 + $0x44] sm:$0xf]
    %v2024 = vld [vmem:[#allocation11 + $0x48] sm:$0xf]
    %v2025 = vld [vmem:[#allocation11 + $0x4c] sm:$0xf]
    %v2026 = vld [vmem:[#allocation11 + $0x50] sm:$0xf]
    %v2027 = vld [vmem:[#allocation11 + $0x54] sm:$0xf]
    %v2028 = vld [vmem:[#allocation11 + $0x58] sm:$0xf]
    %v2029 = vld [vmem:[#allocation11 + $0x5c] sm:$0xf]
    %v2030 = vld [vmem:[#allocation11 + $0x60] sm:$0xf]
    %v2031 = vld [vmem:[#allocation11 + $0x64] sm:$0xf]
    %v2032 = vld [vmem:[#allocation11 + $0x68] sm:$0xf]
    %v2033 = vld [vmem:[#allocation11 + $0x6c] sm:$0xf]
    %v2034 = vld [vmem:[#allocation11 + $0x70] sm:$0xf]
    %v2035 = vld [vmem:[#allocation11 + $0x74] sm:$0xf]
    %v2036 = vld [vmem:[#allocation11 + $0x78] sm:$0xf]
    %v2037 = vld [vmem:[#allocation11 + $0x7c] sm:$0xf]
    %v2038 = vld [vmem:[%s11] sm:$0x1]
    %v2040 = vlaneseq
    %v2041 = vshrl.u32 %v2040, 7
    %v2042 = vsub.s32 0, %v2041
    %v2043 = vrot.slane %v2038, %v2042
    %v2077 = vunpack.c.l.b16 %v2006
    %v2078 = vunpack.c.l.b16 %v2007
    %v2079 = vunpack.c.l.b16 %v2008
    %v2080 = vunpack.c.l.b16 %v2009
    %v2081 = vunpack.c.l.b16 %v2010
    %v2082 = vunpack.c.l.b16 %v2011
    %v2083 = vunpack.c.l.b16 %v2012
    %v2084 = vunpack.c.l.b16 %v2013
    %v2085 = vunpack.c.l.b16 %v2014
    %v2086 = vunpack.c.l.b16 %v2015
    %v2087 = vunpack.c.l.b16 %v2016
    %v2088 = vunpack.c.l.b16 %v2017
    %v2089 = vunpack.c.l.b16 %v2018
    %v2090 = vunpack.c.l.b16 %v2019
    %v2091 = vunpack.c.l.b16 %v2020
    %v2092 = vunpack.c.l.b16 %v2021
    %v2093 = vunpack.c.l.b16 %v2022
    %v2094 = vunpack.c.l.b16 %v2023
    %v2095 = vunpack.c.l.b16 %v2024
    %v2096 = vunpack.c.l.b16 %v2025
    %v2097 = vunpack.c.l.b16 %v2026
    %v2098 = vunpack.c.l.b16 %v2027
    %v2099 = vunpack.c.l.b16 %v2028
    %v2100 = vunpack.c.l.b16 %v2029
    %v2101 = vunpack.c.l.b16 %v2030
    %v2102 = vunpack.c.l.b16 %v2031
    %v2103 = vunpack.c.l.b16 %v2032
    %v2104 = vunpack.c.l.b16 %v2033
    %v2105 = vunpack.c.l.b16 %v2034
    %v2106 = vunpack.c.l.b16 %v2035
    %v2107 = vunpack.c.l.b16 %v2036
    %v2108 = vunpack.c.l.b16 %v2037
    %v2109 = vpack.c.b16 %v2078, %v2077
    %v2110 = vpack.c.b16 %v2080, %v2079
    %v2111 = vpack.c.b16 %v2082, %v2081
    %v2112 = vpack.c.b16 %v2084, %v2083
    %v2113 = vpack.c.b16 %v2086, %v2085
    %v2114 = vpack.c.b16 %v2088, %v2087
    %v2115 = vpack.c.b16 %v2090, %v2089
    %v2116 = vpack.c.b16 %v2092, %v2091
    %v2117 = vpack.c.b16 %v2094, %v2093
    %v2118 = vpack.c.b16 %v2096, %v2095
    %v2119 = vpack.c.b16 %v2098, %v2097
    %v2120 = vpack.c.b16 %v2100, %v2099
    %v2121 = vpack.c.b16 %v2102, %v2101
    %v2122 = vpack.c.b16 %v2104, %v2103
    %v2123 = vpack.c.b16 %v2106, %v2105
    %v2124 = vpack.c.b16 %v2108, %v2107
    %2141 = vmatprep.subr.bf16.mxu0 0
    %2142 = vmatpush1.bf16.msra.mxu0 %v2109
    %2143 = vmatprep.subr.bf16.mxu0 0
    %2144 = vmatpush1.bf16.msra.mxu0 %v2110
    %2145 = vmatprep.subr.bf16.mxu0 0
    %2146 = vmatpush1.bf16.msra.mxu0 %v2111
    %2147 = vmatprep.subr.bf16.mxu0 0
    %2148 = vmatpush1.bf16.msra.mxu0 %v2112
    %2149 = vmatprep.subr.bf16.mxu0 0
    %2150 = vmatpush1.bf16.msra.mxu0 %v2113
    %2151 = vmatprep.subr.bf16.mxu0 0
    %2152 = vmatpush1.bf16.msra.mxu0 %v2114
    %2153 = vmatprep.subr.bf16.mxu0 0
    %2154 = vmatpush1.bf16.msra.mxu0 %v2115
    %2155 = vmatprep.subr.bf16.mxu0 0
    %2156 = vmatpush1.bf16.msra.mxu0 %v2116
    %2157 = vmatprep.subr.bf16.mxu0 0
    %2158 = vmatpush1.bf16.msra.mxu0 %v2117
    %2159 = vmatprep.subr.bf16.mxu0 0
    %2160 = vmatpush1.bf16.msra.mxu0 %v2118
    %2161 = vmatprep.subr.bf16.mxu0 0
    %2162 = vmatpush1.bf16.msra.mxu0 %v2119
    %2163 = vmatprep.subr.bf16.mxu0 0
    %2164 = vmatpush1.bf16.msra.mxu0 %v2120
    %2165 = vmatprep.subr.bf16.mxu0 0
    %2166 = vmatpush1.bf16.msra.mxu0 %v2121
    %2167 = vmatprep.subr.bf16.mxu0 0
    %2168 = vmatpush1.bf16.msra.mxu0 %v2122
    %2169 = vmatprep.subr.bf16.mxu0 0
    %2170 = vmatpush1.bf16.msra.mxu0 %v2123
    %2171 = vmatprep.subr.bf16.mxu0 0
    %2172 = vmatpush1.bf16.msra.mxu0 %v2124
    %2173 = vmatprep.mubr.bf16.mxu0 %v2003
    %2174 = vmatmul.mubr.bf16.gmra.mrb[0].mxu0 %v2002
    %v2175 = vpop.f32.mrb[0].mxu0
    %v2176 = vadd.f32 %v2043, %v2175
    %v2177 = vpop.f32.mrb[0].mxu0
    %v2178 = vpop.f32.mrb[0].mxu0
    %v2179 = vadd.f32 %v2043, %v2178
    %v2180 = vpop.f32.mrb[0].mxu0
    %2181 = vmatprep.mubr.bf16.mxu0 %v2005
    %2182 = vmatmul.mubr.bf16.gmra.mrb[0].mxu0 %v2004
    %v2183 = vpop.f32.mrb[0].mxu0
    %v2184 = vadd.f32 %v2043, %v2183
    %v2185 = vpop.f32.mrb[0].mxu0
    %v2186 = vpop.f32.mrb[0].mxu0
    %v2187 = vadd.f32 %v2043, %v2186
    %v2188 = vpop.f32.mrb[0].mxu0
    %2189 = vdwg.mxu0
    %v2190 = vadd.f32 %v2176, %v1827
    %v2191 = vadd.f32 %v2179, %v1828
    %v2192 = vadd.f32 %v2184, %v1829
    %v2193 = vadd.f32 %v2187, %v1830
    %v2194 = vld [vmem:[%s12] sm:$0x1]
    %v2195 = vld [vmem:[%s13] sm:$0x1]
    %2196 = vadd.xlane.f32.xlu0 %v2190
    %v2197 = vpop.xlane.xlu0 %2196
    %2198 = vadd.xlane.f32.xlu0 %v2191
    %v2199 = vpop.xlane.xlu0 %2198
    %2200 = vadd.xlane.f32.xlu0 %v2192
    %v2201 = vpop.xlane.xlu0 %2200
    %2202 = vadd.xlane.f32.xlu0 %v2193
    %v2203 = vpop.xlane.xlu0 %2202
    %v2204 = vmul.f32 %v2197, %v1774
    %v2205 = vmul.f32 %v2199, %v1774
    %v2206 = vmul.f32 %v2201, %v1774
    %v2207 = vmul.f32 %v2203, %v1774
    %v2208 = vsub.f32 %v2190, %v2204
    %v2209 = vsub.f32 %v2191, %v2205
    %v2210 = vsub.f32 %v2192, %v2206
    %v2211 = vsub.f32 %v2193, %v2207
    %v2212 = vmul.f32 %v2208, %v2208
    %v2213 = vmul.f32 %v2209, %v2209
    %v2214 = vmul.f32 %v2210, %v2210
    %v2215 = vmul.f32 %v2211, %v2211
    %2216 = vadd.xlane.f32.xlu0 %v2212
    %v2217 = vpop.xlane.xlu0 %2216
    %2218 = vadd.xlane.f32.xlu0 %v2213
    %v2219 = vpop.xlane.xlu0 %2218
    %2220 = vadd.xlane.f32.xlu0 %v2214
    %v2221 = vpop.xlane.xlu0 %2220
    %2222 = vadd.xlane.f32.xlu0 %v2215
    %v2223 = vpop.xlane.xlu0 %2222
    %v2224 = vmul.f32 %v2217, %v1774
    %v2225 = vmul.f32 %v2219, %v1774
    %v2226 = vmul.f32 %v2221, %v1774
    %v2227 = vmul.f32 %v2223, %v1774
    %v2228 = vadd.f32 %v2224, 1e-05
    %v2229 = vadd.f32 %v2225, 1e-05
    %v2230 = vadd.f32 %v2226, 1e-05
    %v2231 = vadd.f32 %v2227, 1e-05
    %v2232 = vrsqrt.pop %v2228
    %v2233 = vrsqrt.pop %v2229
    %v2234 = vrsqrt.pop %v2230
    %v2235 = vrsqrt.pop %v2231
    %v2236 = vmul.f32 %v2208, %v2232
    %v2237 = vmul.f32 %v2209, %v2233
    %v2238 = vmul.f32 %v2210, %v2234
    %v2239 = vmul.f32 %v2211, %v2235
    %v2241 = vlaneseq
    %v2242 = vshrl.u32 %v2241, 7
    %v2243 = vsub.s32 0, %v2242
    %v2244 = vrot.slane %v2194, %v2243
    %v2246 = vmul.f32 %v2236, %v2244
    %v2247 = vmul.f32 %v2237, %v2244
    %v2248 = vmul.f32 %v2238, %v2244
    %v2249 = vmul.f32 %v2239, %v2244
    %v2251 = vlaneseq
    %v2252 = vshrl.u32 %v2251, 7
    %v2253 = vsub.s32 0, %v2252
    %v2254 = vrot.slane %v2195, %v2253
    %v2256 = vadd.f32 %v2246, %v2254
    %v2257 = vadd.f32 %v2247, %v2254
    %v2258 = vadd.f32 %v2248, %v2254
    %v2259 = vadd.f32 %v2249, %v2254
    %2260 = vst [vmem:[#allocation13] sm:$0xff] %v2256
    %2261 = vst [vmem:[#allocation13 + $0x8] sm:$0xff] %v2257
    %2262 = vst [vmem:[#allocation13 + $0x10] sm:$0xff] %v2258
    %2263 = vst [vmem:[#allocation13 + $0x18] sm:$0xff] %v2259
    // Predicated region
    $region82: #{encoder_layer.1} parent=1 // pred_check
      _
    $region83: #{encoder_layer.1} parent=1 // pred_check_branch
      %2265 = sbr.rel (0) target = $region85
    $region84: #{encoder_layer.1} parent=1 // pred_region
      %s2267 = ssub.s32 512, 512
      %2268 = vsyncadd [#allocation4], %s2267
      %s2269 = sshll.u32 [#allocation13], 4
      %s2270 = int_to_ptr.vmem [resolvable:$true] %s2269
      %2275 = dma.vmem_to_hbm [thread:$0]  %s2270, 512, %s14, [#allocation4], 128, 128, 8
    $region85: #{encoder_layer.1} parent=1 // pred_fallthru
      _
    // Predicated region
    $region86: #{encoder_layer.1} parent=1 // pred_check
      _
    $region87: #{encoder_layer.1} parent=1 // pred_check_branch
      %2277 = sbr.rel (0) target = $region89
    $region88: #{encoder_layer.1} parent=1 // pred_region
      %s2279 = ssub.s32 2048, 2048
      %2280 = vsyncadd [#allocation15], %s2279
      %s2281 = sshll.u32 [#allocation14], 4
      %s2282 = int_to_ptr.vmem [resolvable:$true] %s2281
      %2287 = dma.vmem_to_hbm [thread:$0]  %s2282, 2048, %s15, [#allocation15], 128, 128, 8
    $region89: #{encoder_layer.1} parent=1 // pred_fallthru
      _
    // Predicated region
    $region90: #{encoder_layer.1} parent=1 // pred_check
      _
    $region91: #{encoder_layer.1} parent=1 // pred_check_branch
      %2289 = sbr.rel (0) target = $region93
    $region92: #{encoder_layer.1} parent=1 // pred_region
      %2290 = dma.done [#allocation4], 512
    $region93: #{encoder_layer.1} parent=1 // pred_fallthru
      _
    // Predicated region
    $region94: #{encoder_layer.1} parent=1 // pred_check
      _
    $region95: #{encoder_layer.1} parent=1 // pred_check_branch
      %2292 = sbr.rel (0) target = $region97
    $region96: #{encoder_layer.1} parent=1 // pred_region
      %2293 = dma.done [#allocation15], 2048
    $region97: #{encoder_layer.1} parent=1 // pred_fallthru
      _
    %2294 = vsyncpa [#allocation3], 1
    %2295 = vsyncpa [#allocation6], 1
    %2296 = vsyncpa [#allocation9], 1
    %2297 = vsyncpa [#allocation12], 1
    %2298 = vsyncpa [#allocation4], 1
    %2299 = vsyncpa [#allocation15], 1

</llo_original>
